<compile_context>
chip_gen: v7x
topology: tpu7x:2x2x1
jax: 0.10.0
libtpu: 0.0.40
codegen_flags: <defaults>
</compile_context>

<pallas_src>
import jax
import jax.numpy as jnp
from jax.experimental import pallas as pl
from jax.experimental.pallas import tpu as pltpu


_B_MAX = 256                      # max samples per grid step (multiple of 16)
_VMEM_LIMIT = 48 * 1024 * 1024    # explicit cap: headroom below v7x's 64 MiB/TC


# ----------------------------------------------------------------------------
# Fused kernel
# ----------------------------------------------------------------------------
def _fused_cnn_kernel(x_ref, w1_ref, cb1_ref, w2_ref, cb2_ref,
                      wfc1_ref, bfc1_ref, wout_ref, bout_ref, o_ref):
    f32 = jnp.float32
    bf16 = jnp.bfloat16
    bsz = o_ref.shape[0]                                  # samples in this tile

    # ---- conv1: single dot (M=24*B, K=140, N=256 = even|pad|odd bands) ------
    acc1 = jnp.dot(x_ref[...], w1_ref[...], preferred_element_type=f32)
    m1 = jnp.maximum(acc1[:, :128], acc1[:, 128:])        # column-parity max (aligned)
    cb1 = cb1_ref[...]
    h1_rows = [
        jnp.maximum(jnp.maximum(m1[(2 * r) * bsz:(2 * r + 1) * bsz],
                                m1[(2 * r + 1) * bsz:(2 * r + 2) * bsz]) + cb1,
                    0.0).astype(bf16)                     # bias+relu+bf16 before concat
        for r in range(12)]                               # 12 x (B, 128): pooled rows

    # ---- conv2: lane-aligned K-concat of 5 row taps -> single dot (K=640) ---
    h1 = jnp.concatenate(h1_rows, axis=0)                 # (12*B, 128) bf16
    lhs2 = jnp.concatenate([h1[ki * bsz:(ki + 8) * bsz] for ki in range(5)],
                           axis=1)                        # (8*B, 640) bf16
    acc2 = jnp.dot(lhs2, w2_ref[...], preferred_element_type=f32)   # (8*B, 256)
    m2 = jnp.maximum(acc2[:, :128], acc2[:, 128:])
    cb2 = cb2_ref[...]
    h2_rows = [
        jnp.maximum(jnp.maximum(m2[(2 * r) * bsz:(2 * r + 1) * bsz],
                                m2[(2 * r + 1) * bsz:(2 * r + 2) * bsz]) + cb2,
                    0.0).astype(bf16)
        for r in range(4)]                                # 4 x (B, 128): pooled rows

    # ---- flatten + fc1 as one K=512 dot + ReLU -------------------------------
    # TODO(synk): dropout(p=0.2) kept as identity (eval-mode semantics); training
    # would mask via pltpu.prng_seed / pltpu.prng_random_bits.
    h2 = jnp.concatenate(h2_rows, axis=1)                 # (B, 512) bf16, aligned concat
    a1 = jnp.maximum(
        jnp.dot(h2, wfc1_ref[...], preferred_element_type=f32) + bfc1_ref[...],
        0.0).astype(bf16)                                 # (B, 128); cols 50.. are 0

    # ---- output layer + log_softmax (pad classes biased to -1e30 -> exp()=0) -
    logits = jnp.dot(a1, wout_ref[...], preferred_element_type=f32) + bout_ref[...]
    mx = jnp.max(logits, axis=-1, keepdims=True)
    s = logits - mx
    lse = jnp.log(jnp.sum(jnp.exp(s), axis=-1, keepdims=True))
    o_ref[...] = (s - lse).astype(o_ref.dtype)            # (B, 128) lane-dense store


# ----------------------------------------------------------------------------
# Wrapper-side (tiny, weight-only) layout transforms
# ----------------------------------------------------------------------------
def _conv1_mat(conv1_w):
    """(10,1,5,5) -> (140, 256): rows ki*28+w, cols [even band|pad8|odd band|pad8].
    Band[ki*28+w, c*10+o (+128 for odd)] = w1[o, ki, w-(2c+dc)] within the window."""
    wk = jnp.transpose(conv1_w.reshape(10, 5, 5), (1, 2, 0))        # (ki, kj, o)
    bands = []
    for dc in (0, 1):
        cols = [jnp.pad(wk, ((0, 0), (2 * c + dc, 23 - (2 * c + dc)), (0, 0)))
                for c in range(12)]                                 # each (5, 28, 10)
        band = jnp.stack(cols, axis=2).reshape(5, 28, 120)          # (ki, w, c*10+o)
        bands.append(jnp.pad(band, ((0, 0), (0, 0), (0, 8))))       # -> (5, 28, 128)
    return jnp.concatenate(bands, axis=2).reshape(140, 256)


def _conv2_mat(conv2_w):
    """(20,10,5,5) -> (640, 256): rows ki*128 + c*10+cin, cols [even|pad|odd|pad].
    Band[ki*128+c*10+cin, c2*20+o (+128)] = w2[o, cin, ki, c-(2c2+dc)] in window."""
    wk = jnp.transpose(conv2_w, (2, 3, 1, 0))                       # (ki, kj, cin, o)
    bands = []
    for dc in (0, 1):
        cols = [jnp.pad(wk, ((0, 0), (2 * c2 + dc, 7 - (2 * c2 + dc)), (0, 0), (0, 0)))
                for c2 in range(4)]                                 # each (5, 12, 10, 20)
        band = jnp.stack(cols, axis=3).reshape(5, 120, 80)          # (ki, c*10+cin, c2*20+o)
        bands.append(jnp.pad(band, ((0, 0), (0, 8), (0, 48))))      # -> (5, 128, 128)
    return jnp.concatenate(bands, axis=2).reshape(640, 256)


def _fc1_mat(fc1_w):
    """fc1_w (320,50), PyTorch flatten order o*16+r*4+c  ->  (512, 128) with rows
    ordered r*128 + c*20 + o (our h2 layout), zero-padded rows/cols."""
    w = fc1_w.reshape(20, 4, 4, 50)                  # (o, r, c, j)
    w = jnp.transpose(w, (1, 2, 0, 3)).reshape(4, 80, 50)   # (r, c*20+o, j)
    return jnp.pad(w, ((0, 0), (0, 48), (0, 78))).reshape(512, 128)


def _out_mat(out_w):
    """(50,10) -> (128,128), zero padded."""
    return jnp.pad(out_w, ((0, 78), (0, 118)))


def _out_bias(out_b):
    """(10,) -> (1,128); pad classes get -1e30 so exp() underflows to exactly 0."""
    return jnp.full((128,), -1e30, jnp.float32).at[:10].set(out_b).reshape(1, 128)


def _pick_block(n):
    """Adaptive batch tile: multiple of 16 (bf16 sublanes), capped at _B_MAX,
    sized so small batches aren't padded up and large batches give >=2 steps."""
    half = -(-n // 2)
    blk = -(-half // 16) * 16
    return int(max(16, min(_B_MAX, blk)))


# ----------------------------------------------------------------------------
# Model: deterministic parameter init + forward
# ----------------------------------------------------------------------------
def init_params(key):
    def uniform(k, shape, fan_in):
        bound = 1.0 / jnp.sqrt(jnp.float32(fan_in))
        return jax.random.uniform(k, shape, jnp.float32, -bound, bound)

    ks = jax.random.split(key, 8)
    return {
        "conv1_w": uniform(ks[0], (10, 1, 5, 5), 1 * 5 * 5),
        "conv1_b": uniform(ks[1], (10,), 1 * 5 * 5),
        "conv2_w": uniform(ks[2], (20, 10, 5, 5), 10 * 5 * 5),
        "conv2_b": uniform(ks[3], (20,), 10 * 5 * 5),
        "fc1_w": uniform(ks[4], (320, 50), 320),   # (in, out) = PyTorch W.T
        "fc1_b": uniform(ks[5], (50,), 320),
        "out_w": uniform(ks[6], (50, 10), 50),
        "out_b": uniform(ks[7], (10,), 50),
    }


@jax.jit
def forward(params, x):
    """x: (N, 1, 28, 28) float32 (NCHW) -> (N, 10) float32 log-probabilities."""
    n = x.shape[0]
    blk = _pick_block(n)
    n_pad = -(-n // blk) * blk
    nb = n_pad // blk

    # bf16 first (halves wrapper-side layout traffic), then im2col over the 5
    # conv1 row taps: rows ordered (block, out_row, sample), 140 = 5 taps x 28 cols.
    xt = x.reshape(n, 28, 28).astype(jnp.bfloat16)
    if n_pad != n:
        xt = jnp.pad(xt, ((0, n_pad - n), (0, 0), (0, 0)))
    xt = xt.reshape(nb, blk, 28, 28)
    win = jnp.stack([xt[:, :, ki:ki + 24, :] for ki in range(5)], axis=3)
    x_lhs = jnp.transpose(win, (0, 2, 1, 3, 4)).reshape(nb * 24 * blk, 140)

    bf16, f32 = jnp.bfloat16, jnp.float32
    args = (
        x_lhs,
        _conv1_mat(params["conv1_w"]).astype(bf16),
        jnp.pad(jnp.tile(params["conv1_b"], 12), (0, 8)).reshape(1, 128).astype(f32),
        _conv2_mat(params["conv2_w"]).astype(bf16),
        jnp.pad(jnp.tile(params["conv2_b"], 4), (0, 48)).reshape(1, 128).astype(f32),
        _fc1_mat(params["fc1_w"]).astype(bf16),
        jnp.pad(params["fc1_b"], (0, 78)).reshape(1, 128).astype(f32),
        _out_mat(params["out_w"]).astype(bf16),
        _out_bias(params["out_b"]),
    )

    def full(shape):
        return pl.BlockSpec(shape, lambda *_: (0,) * len(shape))

    out = pl.pallas_call(
        _fused_cnn_kernel,
        out_shape=jax.ShapeDtypeStruct((n_pad, 128), jnp.float32),
        grid=(nb,),
        in_specs=[
            pl.BlockSpec((24 * blk, 140), lambda i: (i, 0)),   # im2col'd images
            full((140, 256)), full((1, 128)),                  # conv1 RHS, bias
            full((640, 256)), full((1, 128)),                  # conv2 RHS, bias
            full((512, 128)), full((1, 128)),                  # fc1 RHS, bias
            full((128, 128)), full((1, 128)),                  # out RHS, bias
        ],
        out_specs=pl.BlockSpec((blk, 128), lambda i: (i, 0)),
        compiler_params=pltpu.CompilerParams(
            dimension_semantics=("parallel",),
            vmem_limit_bytes=_VMEM_LIMIT),
    )(*args)
    return out[:n, :10]


@jax.jit
def forward_reference(params, x):
    """Pure-JAX (XLA) reference with identical semantics, for self-checking."""
    def conv_pool(h, w, b):
        y = jax.lax.conv_general_dilated(
            h, w, window_strides=(1, 1), padding="VALID",
            dimension_numbers=("NCHW", "OIHW", "NCHW"))
        y = y + b[None, :, None, None]
        n, c, hh, ww = y.shape
        y = y.reshape(n, c, hh // 2, 2, ww // 2, 2).max(axis=(3, 5))
        return jnp.maximum(y, 0.0)

    h = conv_pool(x, params["conv1_w"], params["conv1_b"])
    h = conv_pool(h, params["conv2_w"], params["conv2_b"])
    h = h.reshape(h.shape[0], -1)                               # (N, 320), (C,H,W) order
    h = jnp.maximum(h @ params["fc1_w"] + params["fc1_b"], 0.0)
    logits = h @ params["out_w"] + params["out_b"]
    return jax.nn.log_softmax(logits, axis=-1)


if __name__ == "__main__":
    key = jax.random.PRNGKey(0)
    pkey, xkey = jax.random.split(key)
    params = init_params(pkey)
    x = jax.random.normal(xkey, (2, 1, 28, 28), dtype=jnp.float32)

    out = jax.block_until_ready(forward(params, x))
    assert out.shape == (2, 10)
    # log_softmax rows sum to 1 in probability space
    assert bool(jnp.allclose(jnp.sum(jnp.exp(out), axis=1), 1.0, atol=1e-4))
    # cross-check the fused bf16 Pallas kernel against the f32 XLA reference
    ref = jax.block_until_ready(forward_reference(params, x))
    err = float(jnp.max(jnp.abs(out - ref)))
    assert err < 0.25, f"kernel/reference mismatch: max abs err = {err}"
    print("KERNEL_OK")
</pallas_src>

<mosaic_0001>
module attributes {stable_mosaic.version = 11 : i64} {
  func.func @_fused_cnn_kernel(%arg0: i32, %arg1: memref<384x140xbf16, #tpu.memory_space<vmem>>, %arg2: memref<140x256xbf16, #tpu.memory_space<vmem>>, %arg3: memref<1x128xf32, #tpu.memory_space<vmem>>, %arg4: memref<640x256xbf16, #tpu.memory_space<vmem>>, %arg5: memref<1x128xf32, #tpu.memory_space<vmem>>, %arg6: memref<512x128xbf16, #tpu.memory_space<vmem>>, %arg7: memref<1x128xf32, #tpu.memory_space<vmem>>, %arg8: memref<128x128xbf16, #tpu.memory_space<vmem>>, %arg9: memref<1x128xf32, #tpu.memory_space<vmem>>, %arg10: memref<16x128xf32, #tpu.memory_space<vmem>>) attributes {dimension_semantics = [#tpu.dimension_semantics<parallel>], iteration_bounds = array<i64: 1>, scalar_prefetch = 0 : i64, scratch_operands = 0 : i64, tpu.core_type = #tpu.core_type<tc>, window_params = [{transform_indices = @transform_0, window_bounds = array<i64: 384, 140>}, {pipeline_mode = #tpu.pipeline_mode<synchronous>, transform_indices = @transform_1, window_bounds = array<i64: 140, 256>}, {pipeline_mode = #tpu.pipeline_mode<synchronous>, transform_indices = @transform_2, window_bounds = array<i64: 1, 128>}, {pipeline_mode = #tpu.pipeline_mode<synchronous>, transform_indices = @transform_3, window_bounds = array<i64: 640, 256>}, {pipeline_mode = #tpu.pipeline_mode<synchronous>, transform_indices = @transform_4, window_bounds = array<i64: 1, 128>}, {pipeline_mode = #tpu.pipeline_mode<synchronous>, transform_indices = @transform_5, window_bounds = array<i64: 512, 128>}, {pipeline_mode = #tpu.pipeline_mode<synchronous>, transform_indices = @transform_6, window_bounds = array<i64: 1, 128>}, {pipeline_mode = #tpu.pipeline_mode<synchronous>, transform_indices = @transform_7, window_bounds = array<i64: 128, 128>}, {pipeline_mode = #tpu.pipeline_mode<synchronous>, transform_indices = @transform_8, window_bounds = array<i64: 1, 128>}, {transform_indices = @transform_9, window_bounds = array<i64: 16, 128>}]} {
    %c0 = arith.constant 0 : index
    %c0_0 = arith.constant 0 : index
    %0 = vector.load %arg1[%c0, %c0_0] : memref<384x140xbf16, #tpu.memory_space<vmem>>, vector<384x140xbf16>
    %c0_1 = arith.constant 0 : index
    %c0_2 = arith.constant 0 : index
    %1 = vector.load %arg2[%c0_1, %c0_2] : memref<140x256xbf16, #tpu.memory_space<vmem>>, vector<140x256xbf16>
    %cst = arith.constant dense<0.000000e+00> : vector<384x256xf32>
    %2 = tpu.matmul %0, %1, %cst {dimension_numbers = #tpu.dot_dimension_numbers<[1], [0], [0], [1], [0, 0, 1, 1], [], []>} : vector<384x140xbf16>, vector<140x256xbf16>, vector<384x256xf32> -> vector<384x256xf32>
    %3 = vector.extract_strided_slice %2 {offsets = [0, 0], sizes = [384, 128], strides = [1, 1]} : vector<384x256xf32> to vector<384x128xf32>
    %4 = vector.extract_strided_slice %2 {offsets = [0, 128], sizes = [384, 128], strides = [1, 1]} : vector<384x256xf32> to vector<384x128xf32>
    %5 = arith.maximumf %3, %4 : vector<384x128xf32>
    %c0_3 = arith.constant 0 : index
    %c0_4 = arith.constant 0 : index
    %6 = vector.load %arg3[%c0_3, %c0_4] : memref<1x128xf32, #tpu.memory_space<vmem>>, vector<1x128xf32>
    %7 = vector.extract_strided_slice %5 {offsets = [0, 0], sizes = [16, 128], strides = [1, 1]} : vector<384x128xf32> to vector<16x128xf32>
    %8 = vector.extract_strided_slice %5 {offsets = [16, 0], sizes = [16, 128], strides = [1, 1]} : vector<384x128xf32> to vector<16x128xf32>
    %9 = arith.maximumf %7, %8 : vector<16x128xf32>
    %10 = vector.broadcast %6 : vector<1x128xf32> to vector<16x128xf32>
    %11 = arith.addf %9, %10 : vector<16x128xf32>
    %cst_5 = arith.constant 0.000000e+00 : f32
    %12 = vector.broadcast %cst_5 : f32 to vector<16x128xf32>
    %13 = arith.maximumf %11, %12 : vector<16x128xf32>
    %14 = arith.truncf %13 : vector<16x128xf32> to vector<16x128xbf16>
    %15 = vector.extract_strided_slice %5 {offsets = [32, 0], sizes = [16, 128], strides = [1, 1]} : vector<384x128xf32> to vector<16x128xf32>
    %16 = vector.extract_strided_slice %5 {offsets = [48, 0], sizes = [16, 128], strides = [1, 1]} : vector<384x128xf32> to vector<16x128xf32>
    %17 = arith.maximumf %15, %16 : vector<16x128xf32>
    %18 = vector.broadcast %6 : vector<1x128xf32> to vector<16x128xf32>
    %19 = arith.addf %17, %18 : vector<16x128xf32>
    %cst_6 = arith.constant 0.000000e+00 : f32
    %20 = vector.broadcast %cst_6 : f32 to vector<16x128xf32>
    %21 = arith.maximumf %19, %20 : vector<16x128xf32>
    %22 = arith.truncf %21 : vector<16x128xf32> to vector<16x128xbf16>
    %23 = vector.extract_strided_slice %5 {offsets = [64, 0], sizes = [16, 128], strides = [1, 1]} : vector<384x128xf32> to vector<16x128xf32>
    %24 = vector.extract_strided_slice %5 {offsets = [80, 0], sizes = [16, 128], strides = [1, 1]} : vector<384x128xf32> to vector<16x128xf32>
    %25 = arith.maximumf %23, %24 : vector<16x128xf32>
    %26 = vector.broadcast %6 : vector<1x128xf32> to vector<16x128xf32>
    %27 = arith.addf %25, %26 : vector<16x128xf32>
    %cst_7 = arith.constant 0.000000e+00 : f32
    %28 = vector.broadcast %cst_7 : f32 to vector<16x128xf32>
    %29 = arith.maximumf %27, %28 : vector<16x128xf32>
    %30 = arith.truncf %29 : vector<16x128xf32> to vector<16x128xbf16>
    %31 = vector.extract_strided_slice %5 {offsets = [96, 0], sizes = [16, 128], strides = [1, 1]} : vector<384x128xf32> to vector<16x128xf32>
    %32 = vector.extract_strided_slice %5 {offsets = [112, 0], sizes = [16, 128], strides = [1, 1]} : vector<384x128xf32> to vector<16x128xf32>
    %33 = arith.maximumf %31, %32 : vector<16x128xf32>
    %34 = vector.broadcast %6 : vector<1x128xf32> to vector<16x128xf32>
    %35 = arith.addf %33, %34 : vector<16x128xf32>
    %cst_8 = arith.constant 0.000000e+00 : f32
    %36 = vector.broadcast %cst_8 : f32 to vector<16x128xf32>
    %37 = arith.maximumf %35, %36 : vector<16x128xf32>
    %38 = arith.truncf %37 : vector<16x128xf32> to vector<16x128xbf16>
    %39 = vector.extract_strided_slice %5 {offsets = [128, 0], sizes = [16, 128], strides = [1, 1]} : vector<384x128xf32> to vector<16x128xf32>
    %40 = vector.extract_strided_slice %5 {offsets = [144, 0], sizes = [16, 128], strides = [1, 1]} : vector<384x128xf32> to vector<16x128xf32>
    %41 = arith.maximumf %39, %40 : vector<16x128xf32>
    %42 = vector.broadcast %6 : vector<1x128xf32> to vector<16x128xf32>
    %43 = arith.addf %41, %42 : vector<16x128xf32>
    %cst_9 = arith.constant 0.000000e+00 : f32
    %44 = vector.broadcast %cst_9 : f32 to vector<16x128xf32>
    %45 = arith.maximumf %43, %44 : vector<16x128xf32>
    %46 = arith.truncf %45 : vector<16x128xf32> to vector<16x128xbf16>
    %47 = vector.extract_strided_slice %5 {offsets = [160, 0], sizes = [16, 128], strides = [1, 1]} : vector<384x128xf32> to vector<16x128xf32>
    %48 = vector.extract_strided_slice %5 {offsets = [176, 0], sizes = [16, 128], strides = [1, 1]} : vector<384x128xf32> to vector<16x128xf32>
    %49 = arith.maximumf %47, %48 : vector<16x128xf32>
    %50 = vector.broadcast %6 : vector<1x128xf32> to vector<16x128xf32>
    %51 = arith.addf %49, %50 : vector<16x128xf32>
    %cst_10 = arith.constant 0.000000e+00 : f32
    %52 = vector.broadcast %cst_10 : f32 to vector<16x128xf32>
    %53 = arith.maximumf %51, %52 : vector<16x128xf32>
    %54 = arith.truncf %53 : vector<16x128xf32> to vector<16x128xbf16>
    %55 = vector.extract_strided_slice %5 {offsets = [192, 0], sizes = [16, 128], strides = [1, 1]} : vector<384x128xf32> to vector<16x128xf32>
    %56 = vector.extract_strided_slice %5 {offsets = [208, 0], sizes = [16, 128], strides = [1, 1]} : vector<384x128xf32> to vector<16x128xf32>
    %57 = arith.maximumf %55, %56 : vector<16x128xf32>
    %58 = vector.broadcast %6 : vector<1x128xf32> to vector<16x128xf32>
    %59 = arith.addf %57, %58 : vector<16x128xf32>
    %cst_11 = arith.constant 0.000000e+00 : f32
    %60 = vector.broadcast %cst_11 : f32 to vector<16x128xf32>
    %61 = arith.maximumf %59, %60 : vector<16x128xf32>
    %62 = arith.truncf %61 : vector<16x128xf32> to vector<16x128xbf16>
    %63 = vector.extract_strided_slice %5 {offsets = [224, 0], sizes = [16, 128], strides = [1, 1]} : vector<384x128xf32> to vector<16x128xf32>
    %64 = vector.extract_strided_slice %5 {offsets = [240, 0], sizes = [16, 128], strides = [1, 1]} : vector<384x128xf32> to vector<16x128xf32>
    %65 = arith.maximumf %63, %64 : vector<16x128xf32>
    %66 = vector.broadcast %6 : vector<1x128xf32> to vector<16x128xf32>
    %67 = arith.addf %65, %66 : vector<16x128xf32>
    %cst_12 = arith.constant 0.000000e+00 : f32
    %68 = vector.broadcast %cst_12 : f32 to vector<16x128xf32>
    %69 = arith.maximumf %67, %68 : vector<16x128xf32>
    %70 = arith.truncf %69 : vector<16x128xf32> to vector<16x128xbf16>
    %71 = vector.extract_strided_slice %5 {offsets = [256, 0], sizes = [16, 128], strides = [1, 1]} : vector<384x128xf32> to vector<16x128xf32>
    %72 = vector.extract_strided_slice %5 {offsets = [272, 0], sizes = [16, 128], strides = [1, 1]} : vector<384x128xf32> to vector<16x128xf32>
    %73 = arith.maximumf %71, %72 : vector<16x128xf32>
    %74 = vector.broadcast %6 : vector<1x128xf32> to vector<16x128xf32>
    %75 = arith.addf %73, %74 : vector<16x128xf32>
    %cst_13 = arith.constant 0.000000e+00 : f32
    %76 = vector.broadcast %cst_13 : f32 to vector<16x128xf32>
    %77 = arith.maximumf %75, %76 : vector<16x128xf32>
    %78 = arith.truncf %77 : vector<16x128xf32> to vector<16x128xbf16>
    %79 = vector.extract_strided_slice %5 {offsets = [288, 0], sizes = [16, 128], strides = [1, 1]} : vector<384x128xf32> to vector<16x128xf32>
    %80 = vector.extract_strided_slice %5 {offsets = [304, 0], sizes = [16, 128], strides = [1, 1]} : vector<384x128xf32> to vector<16x128xf32>
    %81 = arith.maximumf %79, %80 : vector<16x128xf32>
    %82 = vector.broadcast %6 : vector<1x128xf32> to vector<16x128xf32>
    %83 = arith.addf %81, %82 : vector<16x128xf32>
    %cst_14 = arith.constant 0.000000e+00 : f32
    %84 = vector.broadcast %cst_14 : f32 to vector<16x128xf32>
    %85 = arith.maximumf %83, %84 : vector<16x128xf32>
    %86 = arith.truncf %85 : vector<16x128xf32> to vector<16x128xbf16>
    %87 = vector.extract_strided_slice %5 {offsets = [320, 0], sizes = [16, 128], strides = [1, 1]} : vector<384x128xf32> to vector<16x128xf32>
    %88 = vector.extract_strided_slice %5 {offsets = [336, 0], sizes = [16, 128], strides = [1, 1]} : vector<384x128xf32> to vector<16x128xf32>
    %89 = arith.maximumf %87, %88 : vector<16x128xf32>
    %90 = vector.broadcast %6 : vector<1x128xf32> to vector<16x128xf32>
    %91 = arith.addf %89, %90 : vector<16x128xf32>
    %cst_15 = arith.constant 0.000000e+00 : f32
    %92 = vector.broadcast %cst_15 : f32 to vector<16x128xf32>
    %93 = arith.maximumf %91, %92 : vector<16x128xf32>
    %94 = arith.truncf %93 : vector<16x128xf32> to vector<16x128xbf16>
    %95 = vector.extract_strided_slice %5 {offsets = [352, 0], sizes = [16, 128], strides = [1, 1]} : vector<384x128xf32> to vector<16x128xf32>
    %96 = vector.extract_strided_slice %5 {offsets = [368, 0], sizes = [16, 128], strides = [1, 1]} : vector<384x128xf32> to vector<16x128xf32>
    %97 = arith.maximumf %95, %96 : vector<16x128xf32>
    %98 = vector.broadcast %6 : vector<1x128xf32> to vector<16x128xf32>
    %99 = arith.addf %97, %98 : vector<16x128xf32>
    %cst_16 = arith.constant 0.000000e+00 : f32
    %100 = vector.broadcast %cst_16 : f32 to vector<16x128xf32>
    %101 = arith.maximumf %99, %100 : vector<16x128xf32>
    %102 = arith.truncf %101 : vector<16x128xf32> to vector<16x128xbf16>
    %103 = tpu.concatenate %14, %22, %30, %38, %46, %54, %62, %70, %78, %86, %94, %102 in 0 : vector<16x128xbf16>, vector<16x128xbf16>, vector<16x128xbf16>, vector<16x128xbf16>, vector<16x128xbf16>, vector<16x128xbf16>, vector<16x128xbf16>, vector<16x128xbf16>, vector<16x128xbf16>, vector<16x128xbf16>, vector<16x128xbf16>, vector<16x128xbf16> -> vector<192x128xbf16>
    %104 = vector.extract_strided_slice %103 {offsets = [0, 0], sizes = [128, 128], strides = [1, 1]} : vector<192x128xbf16> to vector<128x128xbf16>
    %105 = vector.extract_strided_slice %103 {offsets = [16, 0], sizes = [128, 128], strides = [1, 1]} : vector<192x128xbf16> to vector<128x128xbf16>
    %106 = vector.extract_strided_slice %103 {offsets = [32, 0], sizes = [128, 128], strides = [1, 1]} : vector<192x128xbf16> to vector<128x128xbf16>
    %107 = vector.extract_strided_slice %103 {offsets = [48, 0], sizes = [128, 128], strides = [1, 1]} : vector<192x128xbf16> to vector<128x128xbf16>
    %108 = vector.extract_strided_slice %103 {offsets = [64, 0], sizes = [128, 128], strides = [1, 1]} : vector<192x128xbf16> to vector<128x128xbf16>
    %109 = tpu.concatenate %104, %105, %106, %107, %108 in 1 : vector<128x128xbf16>, vector<128x128xbf16>, vector<128x128xbf16>, vector<128x128xbf16>, vector<128x128xbf16> -> vector<128x640xbf16>
    %c0_17 = arith.constant 0 : index
    %c0_18 = arith.constant 0 : index
    %110 = vector.load %arg4[%c0_17, %c0_18] : memref<640x256xbf16, #tpu.memory_space<vmem>>, vector<640x256xbf16>
    %cst_19 = arith.constant dense<0.000000e+00> : vector<128x256xf32>
    %111 = tpu.matmul %109, %110, %cst_19 {dimension_numbers = #tpu.dot_dimension_numbers<[1], [0], [0], [1], [0, 0, 1, 1], [], []>} : vector<128x640xbf16>, vector<640x256xbf16>, vector<128x256xf32> -> vector<128x256xf32>
    %112 = vector.extract_strided_slice %111 {offsets = [0, 0], sizes = [128, 128], strides = [1, 1]} : vector<128x256xf32> to vector<128x128xf32>
    %113 = vector.extract_strided_slice %111 {offsets = [0, 128], sizes = [128, 128], strides = [1, 1]} : vector<128x256xf32> to vector<128x128xf32>
    %114 = arith.maximumf %112, %113 : vector<128x128xf32>
    %c0_20 = arith.constant 0 : index
    %c0_21 = arith.constant 0 : index
    %115 = vector.load %arg5[%c0_20, %c0_21] : memref<1x128xf32, #tpu.memory_space<vmem>>, vector<1x128xf32>
    %116 = vector.extract_strided_slice %114 {offsets = [0, 0], sizes = [16, 128], strides = [1, 1]} : vector<128x128xf32> to vector<16x128xf32>
    %117 = vector.extract_strided_slice %114 {offsets = [16, 0], sizes = [16, 128], strides = [1, 1]} : vector<128x128xf32> to vector<16x128xf32>
    %118 = arith.maximumf %116, %117 : vector<16x128xf32>
    %119 = vector.broadcast %115 : vector<1x128xf32> to vector<16x128xf32>
    %120 = arith.addf %118, %119 : vector<16x128xf32>
    %cst_22 = arith.constant 0.000000e+00 : f32
    %121 = vector.broadcast %cst_22 : f32 to vector<16x128xf32>
    %122 = arith.maximumf %120, %121 : vector<16x128xf32>
    %123 = arith.truncf %122 : vector<16x128xf32> to vector<16x128xbf16>
    %124 = vector.extract_strided_slice %114 {offsets = [32, 0], sizes = [16, 128], strides = [1, 1]} : vector<128x128xf32> to vector<16x128xf32>
    %125 = vector.extract_strided_slice %114 {offsets = [48, 0], sizes = [16, 128], strides = [1, 1]} : vector<128x128xf32> to vector<16x128xf32>
    %126 = arith.maximumf %124, %125 : vector<16x128xf32>
    %127 = vector.broadcast %115 : vector<1x128xf32> to vector<16x128xf32>
    %128 = arith.addf %126, %127 : vector<16x128xf32>
    %cst_23 = arith.constant 0.000000e+00 : f32
    %129 = vector.broadcast %cst_23 : f32 to vector<16x128xf32>
    %130 = arith.maximumf %128, %129 : vector<16x128xf32>
    %131 = arith.truncf %130 : vector<16x128xf32> to vector<16x128xbf16>
    %132 = vector.extract_strided_slice %114 {offsets = [64, 0], sizes = [16, 128], strides = [1, 1]} : vector<128x128xf32> to vector<16x128xf32>
    %133 = vector.extract_strided_slice %114 {offsets = [80, 0], sizes = [16, 128], strides = [1, 1]} : vector<128x128xf32> to vector<16x128xf32>
    %134 = arith.maximumf %132, %133 : vector<16x128xf32>
    %135 = vector.broadcast %115 : vector<1x128xf32> to vector<16x128xf32>
    %136 = arith.addf %134, %135 : vector<16x128xf32>
    %cst_24 = arith.constant 0.000000e+00 : f32
    %137 = vector.broadcast %cst_24 : f32 to vector<16x128xf32>
    %138 = arith.maximumf %136, %137 : vector<16x128xf32>
    %139 = arith.truncf %138 : vector<16x128xf32> to vector<16x128xbf16>
    %140 = vector.extract_strided_slice %114 {offsets = [96, 0], sizes = [16, 128], strides = [1, 1]} : vector<128x128xf32> to vector<16x128xf32>
    %141 = vector.extract_strided_slice %114 {offsets = [112, 0], sizes = [16, 128], strides = [1, 1]} : vector<128x128xf32> to vector<16x128xf32>
    %142 = arith.maximumf %140, %141 : vector<16x128xf32>
    %143 = vector.broadcast %115 : vector<1x128xf32> to vector<16x128xf32>
    %144 = arith.addf %142, %143 : vector<16x128xf32>
    %cst_25 = arith.constant 0.000000e+00 : f32
    %145 = vector.broadcast %cst_25 : f32 to vector<16x128xf32>
    %146 = arith.maximumf %144, %145 : vector<16x128xf32>
    %147 = arith.truncf %146 : vector<16x128xf32> to vector<16x128xbf16>
    %148 = tpu.concatenate %123, %131, %139, %147 in 1 : vector<16x128xbf16>, vector<16x128xbf16>, vector<16x128xbf16>, vector<16x128xbf16> -> vector<16x512xbf16>
    %c0_26 = arith.constant 0 : index
    %c0_27 = arith.constant 0 : index
    %149 = vector.load %arg6[%c0_26, %c0_27] : memref<512x128xbf16, #tpu.memory_space<vmem>>, vector<512x128xbf16>
    %cst_28 = arith.constant dense<0.000000e+00> : vector<16x128xf32>
    %150 = tpu.matmul %148, %149, %cst_28 {dimension_numbers = #tpu.dot_dimension_numbers<[1], [0], [0], [1], [0, 0, 1, 1], [], []>} : vector<16x512xbf16>, vector<512x128xbf16>, vector<16x128xf32> -> vector<16x128xf32>
    %c0_29 = arith.constant 0 : index
    %c0_30 = arith.constant 0 : index
    %151 = vector.load %arg7[%c0_29, %c0_30] : memref<1x128xf32, #tpu.memory_space<vmem>>, vector<1x128xf32>
    %152 = vector.broadcast %151 : vector<1x128xf32> to vector<16x128xf32>
    %153 = arith.addf %150, %152 : vector<16x128xf32>
    %cst_31 = arith.constant 0.000000e+00 : f32
    %154 = vector.broadcast %cst_31 : f32 to vector<16x128xf32>
    %155 = arith.maximumf %153, %154 : vector<16x128xf32>
    %156 = arith.truncf %155 : vector<16x128xf32> to vector<16x128xbf16>
    %c0_32 = arith.constant 0 : index
    %c0_33 = arith.constant 0 : index
    %157 = vector.load %arg8[%c0_32, %c0_33] : memref<128x128xbf16, #tpu.memory_space<vmem>>, vector<128x128xbf16>
    %cst_34 = arith.constant dense<0.000000e+00> : vector<16x128xf32>
    %158 = tpu.matmul %156, %157, %cst_34 {dimension_numbers = #tpu.dot_dimension_numbers<[1], [0], [0], [1], [0, 0, 1, 1], [], []>} : vector<16x128xbf16>, vector<128x128xbf16>, vector<16x128xf32> -> vector<16x128xf32>
    %c0_35 = arith.constant 0 : index
    %c0_36 = arith.constant 0 : index
    %159 = vector.load %arg9[%c0_35, %c0_36] : memref<1x128xf32, #tpu.memory_space<vmem>>, vector<1x128xf32>
    %160 = vector.broadcast %159 : vector<1x128xf32> to vector<16x128xf32>
    %161 = arith.addf %158, %160 : vector<16x128xf32>
    %cst_37 = arith.constant dense<0xFF800000> : vector<16xf32>
    %162 = vector.multi_reduction <maximumf>, %161, %cst_37 [1] : vector<16x128xf32> to vector<16xf32>
    %163 = vector.shape_cast %162 : vector<16xf32> to vector<16x1xf32>
    %164 = vector.broadcast %163 : vector<16x1xf32> to vector<16x128xf32>
    %165 = arith.subf %161, %164 : vector<16x128xf32>
    %166 = math.exp %165 : vector<16x128xf32>
    %cst_38 = arith.constant dense<0.000000e+00> : vector<16xf32>
    %167 = vector.multi_reduction <add>, %166, %cst_38 [1] : vector<16x128xf32> to vector<16xf32>
    %168 = vector.shape_cast %167 : vector<16xf32> to vector<16x1xf32>
    %169 = math.log %168 : vector<16x1xf32>
    %170 = vector.broadcast %169 : vector<16x1xf32> to vector<16x128xf32>
    %171 = arith.subf %165, %170 : vector<16x128xf32>
    %c0_39 = arith.constant 0 : index
    %c0_40 = arith.constant 0 : index
    %172 = vector.load %arg10[%c0_39, %c0_40] : memref<16x128xf32, #tpu.memory_space<vmem>>, vector<16x128xf32>
    tpu.vector_store %arg10[%c0_39, %c0_40], %171 {strides = array<i32>} : memref<16x128xf32, #tpu.memory_space<vmem>>, vector<16x128xf32>,
    return
  }
  func.func @transform_0(%arg0: i32) -> (i32, i32) {
    %c0_i32 = arith.constant 0 : i32
    %c0_i32_0 = arith.constant 0 : i32
    return %arg0, %c0_i32 : i32, i32
  }
  func.func @transform_1(%arg0: i32) -> (i32, i32) {
    %c0_i32 = arith.constant 0 : i32
    %c0_i32_0 = arith.constant 0 : i32
    %c0_i32_1 = arith.constant 0 : i32
    return %c0_i32, %c0_i32_0 : i32, i32
  }
  func.func @transform_2(%arg0: i32) -> (i32, i32) {
    %c0_i32 = arith.constant 0 : i32
    %c0_i32_0 = arith.constant 0 : i32
    %c0_i32_1 = arith.constant 0 : i32
    return %c0_i32, %c0_i32_0 : i32, i32
  }
  func.func @transform_3(%arg0: i32) -> (i32, i32) {
    %c0_i32 = arith.constant 0 : i32
    %c0_i32_0 = arith.constant 0 : i32
    %c0_i32_1 = arith.constant 0 : i32
    return %c0_i32, %c0_i32_0 : i32, i32
  }
  func.func @transform_4(%arg0: i32) -> (i32, i32) {
    %c0_i32 = arith.constant 0 : i32
    %c0_i32_0 = arith.constant 0 : i32
    %c0_i32_1 = arith.constant 0 : i32
    return %c0_i32, %c0_i32_0 : i32, i32
  }
  func.func @transform_5(%arg0: i32) -> (i32, i32) {
    %c0_i32 = arith.constant 0 : i32
    %c0_i32_0 = arith.constant 0 : i32
    %c0_i32_1 = arith.constant 0 : i32
    return %c0_i32, %c0_i32_0 : i32, i32
  }
  func.func @transform_6(%arg0: i32) -> (i32, i32) {
    %c0_i32 = arith.constant 0 : i32
    %c0_i32_0 = arith.constant 0 : i32
    %c0_i32_1 = arith.constant 0 : i32
    return %c0_i32, %c0_i32_0 : i32, i32
  }
  func.func @transform_7(%arg0: i32) -> (i32, i32) {
    %c0_i32 = arith.constant 0 : i32
    %c0_i32_0 = arith.constant 0 : i32
    %c0_i32_1 = arith.constant 0 : i32
    return %c0_i32, %c0_i32_0 : i32, i32
  }
  func.func @transform_8(%arg0: i32) -> (i32, i32) {
    %c0_i32 = arith.constant 0 : i32
    %c0_i32_0 = arith.constant 0 : i32
    %c0_i32_1 = arith.constant 0 : i32
    return %c0_i32, %c0_i32_0 : i32, i32
  }
  func.func @transform_9(%arg0: i32) -> (i32, i32) {
    %c0_i32 = arith.constant 0 : i32
    %c0_i32_0 = arith.constant 0 : i32
    return %arg0, %c0_i32 : i32, i32
  }
}

</mosaic_0001>

<llo_original>
// kernel: tile.19
$region0: #{tile.19}
  %s0 = inlined_call_operand.vmem [shape: f32[4,20], index: 0, kind: input, shape index: {}]
  %s1 = inlined_call_operand.vmem [shape: f32[80], index: 1, kind: output, shape index: {}]
  $region1: #{tile.19} parent=0
    #allocation0 [shape = 'u8[4096]{0}', space=vmem, size = 0x1000, scoped, tag = 'scoped mem for output reshape']
    #allocation1 [shape = 'u8[4096]{0}', space=vmem, size = 0x1000, scoped, tag = 'scoped mem for input reshape']
    %s3 = sshllo.u32 0, 4
    %v4 = vld [vmem:[%s0] sm:%s3]
    %5 = vst [vmem:[#allocation1] sm:%s3] %v4
    %v6 = vld [vmem:[#allocation1] sm:$0x1]
    %vm7 = vcmask 162816
    %8 = vst.msk [vmem:[#allocation0] sm:$0x1] %vm7, %v6
    %s9 = scalar_lea.vmem [#allocation1], 3
    %v10 = vld [vmem:[%s9] sm:$0x1]
    %11 = vrot.lane.b32.xlu0 %v10, 60
    %v12 = vpop.permute.xlu0 %11
    %vm13 = vcmask 654816
    %14 = vst.msk [vmem:[#allocation0] sm:$0x1] %vm13, %v12
    %s15 = scalar_lea.vmem [#allocation1], 2
    %v16 = vld [vmem:[%s15] sm:$0x1]
    %17 = vrot.lane.b32.xlu0 %v16, 40
    %v18 = vpop.permute.xlu0 %17
    %vm19 = vcmask 490816
    %20 = vst.msk [vmem:[#allocation0] sm:$0x1] %vm19, %v18
    %s21 = scalar_lea.vmem [#allocation1], 1
    %v22 = vld [vmem:[%s21] sm:$0x1]
    %23 = vrot.lane.b32.xlu0 %v22, 20
    %v24 = vpop.permute.xlu0 %23
    %vm25 = vcmask 326816
    %26 = vst.msk [vmem:[#allocation0] sm:$0x1] %vm25, %v24
    %s28 = sshllo.u32 0, 1
    %v30 = vld [vmem:[#allocation0] sm:%s28]
    %s31 = sshllo.u32 0, 1
    %32 = vst [vmem:[%s1] sm:%s31] %v30

// kernel: tile.18
$region0: #{tile.18}
  #allocation0 [shape = 's32[1]{0}', space=sflag, size = 0x4, scoped, tag = 'scoped memory for tile.18']
  %s0 = inlined_call_operand.vmem [shape: f32[20], index: 0, kind: input, shape index: {}]
  %s1 = inlined_call_operand.vmem [shape: f32[4,20], index: 1, kind: output, shape index: {}]
  // Predicated region
  $region2: #{tile.18} parent=0 // pred_check
    _
  $region3: #{tile.18} parent=0 // pred_check_branch
    %3 = sbr.rel (0) target = $region5
  $region4: #{tile.18} parent=0 // pred_region
    _
  $region5: #{tile.18} parent=0 // pred_fallthru
    _
  %v4 = vld [vmem:[%s0] ss:$0 sm:$0xff]
  %5 = vst [vmem:[%s1] sm:$0xf] %v4

// kernel: tile.13
$region0: #{tile.13}
  #allocation0 [shape = 's32[1]{0}', space=sflag, size = 0x4, scoped, tag = 'scoped memory for tile.13']
  %s0 = inlined_call_operand.vmem [shape: f32[10], index: 0, kind: input, shape index: {}]
  %s1 = inlined_call_operand.vmem [shape: f32[12,10], index: 1, kind: output, shape index: {}]
  // Predicated region
  $region2: #{tile.13} parent=0 // pred_check
    _
  $region3: #{tile.13} parent=0 // pred_check_branch
    %3 = sbr.rel (0) target = $region5
  $region4: #{tile.13} parent=0 // pred_region
    _
  $region5: #{tile.13} parent=0 // pred_fallthru
    _
  %v4 = vld [vmem:[%s0] ss:$0 sm:$0xff]
  %5 = vst [vmem:[%s1] sm:$0xff] %v4
  %s6 = scalar_lea.vmem %s1, 8
  %7 = vst [vmem:[%s6] sm:$0xff] %v4

// kernel: tile.14
$region0: #{tile.14}
  %s0 = inlined_call_operand.vmem [shape: f32[12,10], index: 0, kind: input, shape index: {}]
  %s1 = inlined_call_operand.vmem [shape: f32[120], index: 1, kind: output, shape index: {}]
  $region1: #{tile.14} parent=0
    #allocation0 [shape = 'u8[4096]{0}', space=vmem, size = 0x1000, scoped, tag = 'scoped mem for output reshape']
    %v2 = vld [vmem:[%s0] sm:$0x1]
    %vm3 = vcmask 80896
    %4 = vst.msk [vmem:[#allocation0] sm:$0x1] %vm3, %v2
    %s5 = scalar_lea.vmem %s0, 11
    %v6 = vld [vmem:[%s5] sm:$0x1]
    %7 = vrot.lane.b32.xlu0 %v6, 110
    %v8 = vpop.permute.xlu0 %7
    %vm9 = vcmask 982896
    %10 = vst.msk [vmem:[#allocation0] sm:$0x1] %vm9, %v8
    %s11 = scalar_lea.vmem %s0, 10
    %v12 = vld [vmem:[%s11] sm:$0x1]
    %13 = vrot.lane.b32.xlu0 %v12, 100
    %v14 = vpop.permute.xlu0 %13
    %vm15 = vcmask 900896
    %16 = vst.msk [vmem:[#allocation0] sm:$0x1] %vm15, %v14
    %s17 = scalar_lea.vmem %s0, 9
    %v18 = vld [vmem:[%s17] sm:$0x1]
    %19 = vrot.lane.b32.xlu0 %v18, 90
    %v20 = vpop.permute.xlu0 %19
    %vm21 = vcmask 818896
    %22 = vst.msk [vmem:[#allocation0] sm:$0x1] %vm21, %v20
    %s23 = scalar_lea.vmem %s0, 8
    %v24 = vld [vmem:[%s23] sm:$0x1]
    %25 = vrot.lane.b32.xlu0 %v24, 80
    %v26 = vpop.permute.xlu0 %25
    %vm27 = vcmask 736896
    %28 = vst.msk [vmem:[#allocation0] sm:$0x1] %vm27, %v26
    %s29 = scalar_lea.vmem %s0, 7
    %v30 = vld [vmem:[%s29] sm:$0x1]
    %31 = vrot.lane.b32.xlu0 %v30, 70
    %v32 = vpop.permute.xlu0 %31
    %vm33 = vcmask 654896
    %34 = vst.msk [vmem:[#allocation0] sm:$0x1] %vm33, %v32
    %s35 = scalar_lea.vmem %s0, 6
    %v36 = vld [vmem:[%s35] sm:$0x1]
    %37 = vrot.lane.b32.xlu0 %v36, 60
    %v38 = vpop.permute.xlu0 %37
    %vm39 = vcmask 572896
    %40 = vst.msk [vmem:[#allocation0] sm:$0x1] %vm39, %v38
    %s41 = scalar_lea.vmem %s0, 5
    %v42 = vld [vmem:[%s41] sm:$0x1]
    %43 = vrot.lane.b32.xlu0 %v42, 50
    %v44 = vpop.permute.xlu0 %43
    %vm45 = vcmask 490896
    %46 = vst.msk [vmem:[#allocation0] sm:$0x1] %vm45, %v44
    %s47 = scalar_lea.vmem %s0, 4
    %v48 = vld [vmem:[%s47] sm:$0x1]
    %49 = vrot.lane.b32.xlu0 %v48, 40
    %v50 = vpop.permute.xlu0 %49
    %vm51 = vcmask 408896
    %52 = vst.msk [vmem:[#allocation0] sm:$0x1] %vm51, %v50
    %s53 = scalar_lea.vmem %s0, 3
    %v54 = vld [vmem:[%s53] sm:$0x1]
    %55 = vrot.lane.b32.xlu0 %v54, 30
    %v56 = vpop.permute.xlu0 %55
    %vm57 = vcmask 326896
    %58 = vst.msk [vmem:[#allocation0] sm:$0x1] %vm57, %v56
    %s59 = scalar_lea.vmem %s0, 2
    %v60 = vld [vmem:[%s59] sm:$0x1]
    %61 = vrot.lane.b32.xlu0 %v60, 20
    %v62 = vpop.permute.xlu0 %61
    %vm63 = vcmask 244896
    %64 = vst.msk [vmem:[#allocation0] sm:$0x1] %vm63, %v62
    %s65 = scalar_lea.vmem %s0, 1
    %v66 = vld [vmem:[%s65] sm:$0x1]
    %67 = vrot.lane.b32.xlu0 %v66, 10
    %v68 = vpop.permute.xlu0 %67
    %vm69 = vcmask 162896
    %70 = vst.msk [vmem:[#allocation0] sm:$0x1] %vm69, %v68
    %s72 = sshllo.u32 0, 1
    %v74 = vld [vmem:[#allocation0] sm:%s72]
    %s75 = sshllo.u32 0, 1
    %76 = vst [vmem:[%s1] sm:%s75] %v74

// kernel: forward.1
$region0: #{forward.1}
  #allocation0 [shape = 'u32[]', space=smem, size = 0x4, offset = 0x4, fixed_abs, tag = 'smem constant byte address 0x4 - core index']
  #allocation1 [shape = 'u32[144,128]{1,0:T(1,128)}', space=vmem, size = 0x12000, scoped, tag = 'internal scratch']
  %s0 = inlined_call_operand.vmem [shape: bf16[384,140], index: 0, kind: input, shape index: {}]
  %s1 = inlined_call_operand.vmem [shape: bf16[140,256], index: 1, kind: input, shape index: {}]
  %s2 = inlined_call_operand.vmem [shape: f32[1,128], index: 2, kind: input, shape index: {}]
  %s3 = inlined_call_operand.vmem [shape: bf16[640,256], index: 3, kind: input, shape index: {}]
  %s4 = inlined_call_operand.vmem [shape: f32[1,128], index: 4, kind: input, shape index: {}]
  %s5 = inlined_call_operand.vmem [shape: bf16[512,128], index: 5, kind: input, shape index: {}]
  %s6 = inlined_call_operand.vmem [shape: f32[1,128], index: 6, kind: input, shape index: {}]
  %s7 = inlined_call_operand.vmem [shape: bf16[128,128], index: 7, kind: input, shape index: {}]
  %s8 = inlined_call_operand.vmem [shape: f32[1,128], index: 8, kind: input, shape index: {}]
  %s9 = inlined_call_operand.vmem [shape: f32[16,128], index: 9, kind: output, shape index: {}]
  %s10 = sld [smem:[#allocation0]]
  $region46: #{forward.1} parent=0
    _
  %s12 = ssub.s32 1, %s10
  %s13 = scalar_select 0, %s12, %s10
  // Predicated region
  $region2: #{forward.1} parent=0 // pred_check
    _
  $region3: #{forward.1} parent=0 // pred_check_branch
    %15 = sbr.rel (0) target = $region5
  $region4: #{forward.1} parent=0 // pred_region
    _
  $region5: #{forward.1} parent=0 // pred_fallthru
    _
  // Predicated region
  $region6: #{forward.1} parent=0 // pred_check
    _
  $region7: #{forward.1} parent=0 // pred_check_branch
    %17 = sbr.rel (0) target = $region9
  $region8: #{forward.1} parent=0 // pred_region
    _
  $region9: #{forward.1} parent=0 // pred_fallthru
    _
  // Predicated region
  $region10: #{forward.1} parent=0 // pred_check
    _
  $region11: #{forward.1} parent=0 // pred_check_branch
    %19 = sbr.rel (0) target = $region13
  $region12: #{forward.1} parent=0 // pred_region
    _
  $region13: #{forward.1} parent=0 // pred_fallthru
    _
  // Predicated region
  $region14: #{forward.1} parent=0 // pred_check
    _
  $region15: #{forward.1} parent=0 // pred_check_branch
    %21 = sbr.rel (0) target = $region17
  $region16: #{forward.1} parent=0 // pred_region
    _
  $region17: #{forward.1} parent=0 // pred_fallthru
    _
  // Predicated region
  $region18: #{forward.1} parent=0 // pred_check
    _
  $region19: #{forward.1} parent=0 // pred_check_branch
    %23 = sbr.rel (0) target = $region21
  $region20: #{forward.1} parent=0 // pred_region
    _
  $region21: #{forward.1} parent=0 // pred_fallthru
    _
  // Predicated region
  $region22: #{forward.1} parent=0 // pred_check
    _
  $region23: #{forward.1} parent=0 // pred_check_branch
    %25 = sbr.rel (0) target = $region25
  $region24: #{forward.1} parent=0 // pred_region
    _
  $region25: #{forward.1} parent=0 // pred_fallthru
    _
  // Predicated region
  $region26: #{forward.1} parent=0 // pred_check
    _
  $region27: #{forward.1} parent=0 // pred_check_branch
    %27 = sbr.rel (0) target = $region29
  $region28: #{forward.1} parent=0 // pred_region
    _
  $region29: #{forward.1} parent=0 // pred_fallthru
    _
  // Predicated region
  $region30: #{forward.1} parent=0 // pred_check
    _
  $region31: #{forward.1} parent=0 // pred_check_branch
    %29 = sbr.rel (0) target = $region33
  $region32: #{forward.1} parent=0 // pred_region
    _
  $region33: #{forward.1} parent=0 // pred_fallthru
    _
  // Predicated region
  $region34: #{forward.1} parent=0 // pred_check
    _
  $region35: #{forward.1} parent=0 // pred_check_branch
    %31 = sbr.rel (0) target = $region37
  $region36: #{forward.1} parent=0 // pred_region
    _
  $region37: #{forward.1} parent=0 // pred_fallthru
    _
  %v33 = vld [vmem:[%s0] sm:$0xff]
  %v34 = vld [vmem:[%s0 + $0x8] sm:$0xff]
  %v35 = vld [vmem:[%s0 + $0x10] sm:$0xff]
  %v36 = vld [vmem:[%s0 + $0x18] sm:$0xff]
  %v37 = vld [vmem:[%s0 + $0x20] sm:$0xff]
  %v38 = vld [vmem:[%s0 + $0x28] sm:$0xff]
  %v39 = vld [vmem:[%s0 + $0x30] sm:$0xff]
  %v40 = vld [vmem:[%s0 + $0x38] sm:$0xff]
  %v41 = vld [vmem:[%s0 + $0x40] sm:$0xff]
  %v42 = vld [vmem:[%s0 + $0x48] sm:$0xff]
  %v43 = vld [vmem:[%s0 + $0x50] sm:$0xff]
  %v44 = vld [vmem:[%s0 + $0x58] sm:$0xff]
  %v45 = vld [vmem:[%s0 + $0x60] sm:$0xff]
  %v46 = vld [vmem:[%s0 + $0x68] sm:$0xff]
  %v47 = vld [vmem:[%s0 + $0x70] sm:$0xff]
  %v48 = vld [vmem:[%s0 + $0x78] sm:$0xff]
  %v49 = vld [vmem:[%s0 + $0x80] sm:$0xff]
  %v50 = vld [vmem:[%s0 + $0x88] sm:$0xff]
  %v51 = vld [vmem:[%s0 + $0x90] sm:$0xff]
  %v52 = vld [vmem:[%s0 + $0x98] sm:$0xff]
  %v53 = vld [vmem:[%s0 + $0xa0] sm:$0xff]
  %v54 = vld [vmem:[%s0 + $0xa8] sm:$0xff]
  %v55 = vld [vmem:[%s0 + $0xb0] sm:$0xff]
  %v56 = vld [vmem:[%s0 + $0xb8] sm:$0xff]
  %v57 = vld [vmem:[%s0 + $0xc0] sm:$0xff]
  %v58 = vld [vmem:[%s0 + $0xc8] sm:$0xff]
  %v59 = vld [vmem:[%s0 + $0xd0] sm:$0xff]
  %v60 = vld [vmem:[%s0 + $0xd8] sm:$0xff]
  %v61 = vld [vmem:[%s0 + $0xe0] sm:$0xff]
  %v62 = vld [vmem:[%s0 + $0xe8] sm:$0xff]
  %v63 = vld [vmem:[%s0 + $0xf0] sm:$0xff]
  %v64 = vld [vmem:[%s0 + $0xf8] sm:$0xff]
  %v65 = vld [vmem:[%s0 + $0x100] sm:$0xff]
  %v66 = vld [vmem:[%s0 + $0x108] sm:$0xff]
  %v67 = vld [vmem:[%s0 + $0x110] sm:$0xff]
  %v68 = vld [vmem:[%s0 + $0x118] sm:$0xff]
  %v69 = vld [vmem:[%s0 + $0x120] sm:$0xff]
  %v70 = vld [vmem:[%s0 + $0x128] sm:$0xff]
  %v71 = vld [vmem:[%s0 + $0x130] sm:$0xff]
  %v72 = vld [vmem:[%s0 + $0x138] sm:$0xff]
  %v73 = vld [vmem:[%s0 + $0x140] sm:$0xff]
  %v74 = vld [vmem:[%s0 + $0x148] sm:$0xff]
  %v75 = vld [vmem:[%s0 + $0x150] sm:$0xff]
  %v76 = vld [vmem:[%s0 + $0x158] sm:$0xff]
  %v77 = vld [vmem:[%s0 + $0x160] sm:$0xff]
  %v78 = vld [vmem:[%s0 + $0x168] sm:$0xff]
  %v79 = vld [vmem:[%s0 + $0x170] sm:$0xff]
  %v80 = vld [vmem:[%s0 + $0x178] sm:$0xff]
  %v81 = vld [vmem:[%s1] sm:$0xff]
  %v82 = vld [vmem:[%s1 + $0x8] sm:$0xff]
  %v83 = vld [vmem:[%s1 + $0x10] sm:$0xff]
  %v84 = vld [vmem:[%s1 + $0x18] sm:$0xff]
  %v85 = vld [vmem:[%s1 + $0x20] sm:$0xff]
  %v86 = vld [vmem:[%s1 + $0x28] sm:$0xff]
  %v87 = vld [vmem:[%s1 + $0x30] sm:$0xff]
  %v88 = vld [vmem:[%s1 + $0x38] sm:$0xff]
  %v89 = vld [vmem:[%s1 + $0x40] sm:$0xff]
  %v90 = vld [vmem:[%s1 + $0x48] sm:$0xff]
  %v91 = vld [vmem:[%s1 + $0x50] sm:$0xff]
  %v92 = vld [vmem:[%s1 + $0x58] sm:$0xff]
  %v93 = vld [vmem:[%s1 + $0x60] sm:$0xff]
  %v94 = vld [vmem:[%s1 + $0x68] sm:$0xff]
  %v95 = vld [vmem:[%s1 + $0x70] sm:$0xff]
  %v96 = vld [vmem:[%s1 + $0x78] sm:$0xff]
  %v97 = vld [vmem:[%s1 + $0x80] sm:$0xff]
  %v98 = vld [vmem:[%s1 + $0x88] sm:$0x33]
  %v147 = vunpack.c.l.b16 %v33
  %v148 = vunpack.c.h.b16 %v33
  %v149 = vunpack.c.l.b16 %v34
  %v150 = vunpack.c.h.b16 %v34
  %v151 = vunpack.c.l.b16 %v35
  %v152 = vunpack.c.h.b16 %v35
  %v153 = vunpack.c.l.b16 %v36
  %v154 = vunpack.c.h.b16 %v36
  %v155 = vunpack.c.l.b16 %v37
  %v156 = vunpack.c.h.b16 %v37
  %v157 = vunpack.c.l.b16 %v38
  %v158 = vunpack.c.h.b16 %v38
  %v159 = vunpack.c.l.b16 %v39
  %v160 = vunpack.c.h.b16 %v39
  %v161 = vunpack.c.l.b16 %v40
  %v162 = vunpack.c.h.b16 %v40
  %v163 = vunpack.c.l.b16 %v41
  %v164 = vunpack.c.h.b16 %v41
  %v165 = vunpack.c.l.b16 %v42
  %v166 = vunpack.c.h.b16 %v42
  %v167 = vunpack.c.l.b16 %v43
  %v168 = vunpack.c.h.b16 %v43
  %v169 = vunpack.c.l.b16 %v44
  %v170 = vunpack.c.h.b16 %v44
  %v171 = vunpack.c.l.b16 %v45
  %v172 = vunpack.c.h.b16 %v45
  %v173 = vunpack.c.l.b16 %v46
  %v174 = vunpack.c.h.b16 %v46
  %v175 = vunpack.c.l.b16 %v47
  %v176 = vunpack.c.h.b16 %v47
  %v177 = vunpack.c.l.b16 %v48
  %v178 = vunpack.c.h.b16 %v48
  %v179 = vunpack.c.l.b16 %v49
  %v180 = vunpack.c.h.b16 %v49
  %v181 = vunpack.c.l.b16 %v50
  %v182 = vunpack.c.h.b16 %v50
  %v183 = vunpack.c.l.b16 %v51
  %v184 = vunpack.c.h.b16 %v51
  %v185 = vunpack.c.l.b16 %v52
  %v186 = vunpack.c.h.b16 %v52
  %v187 = vunpack.c.l.b16 %v53
  %v188 = vunpack.c.h.b16 %v53
  %v189 = vunpack.c.l.b16 %v54
  %v190 = vunpack.c.h.b16 %v54
  %v191 = vunpack.c.l.b16 %v55
  %v192 = vunpack.c.h.b16 %v55
  %v193 = vunpack.c.l.b16 %v56
  %v194 = vunpack.c.h.b16 %v56
  %v195 = vunpack.c.l.b16 %v57
  %v196 = vunpack.c.h.b16 %v57
  %v197 = vunpack.c.l.b16 %v58
  %v198 = vunpack.c.h.b16 %v58
  %v199 = vunpack.c.l.b16 %v59
  %v200 = vunpack.c.h.b16 %v59
  %v201 = vunpack.c.l.b16 %v60
  %v202 = vunpack.c.h.b16 %v60
  %v203 = vunpack.c.l.b16 %v61
  %v204 = vunpack.c.h.b16 %v61
  %v205 = vunpack.c.l.b16 %v62
  %v206 = vunpack.c.h.b16 %v62
  %v207 = vunpack.c.l.b16 %v63
  %v208 = vunpack.c.h.b16 %v63
  %v209 = vunpack.c.l.b16 %v64
  %v210 = vunpack.c.h.b16 %v64
  %v211 = vunpack.c.l.b16 %v65
  %v212 = vunpack.c.h.b16 %v65
  %v213 = vunpack.c.l.b16 %v66
  %v214 = vunpack.c.h.b16 %v66
  %v215 = vunpack.c.l.b16 %v67
  %v216 = vunpack.c.h.b16 %v67
  %v217 = vunpack.c.l.b16 %v68
  %v218 = vunpack.c.h.b16 %v68
  %v219 = vunpack.c.l.b16 %v69
  %v220 = vunpack.c.h.b16 %v69
  %v221 = vunpack.c.l.b16 %v70
  %v222 = vunpack.c.h.b16 %v70
  %v223 = vunpack.c.l.b16 %v71
  %v224 = vunpack.c.h.b16 %v71
  %v225 = vunpack.c.l.b16 %v72
  %v226 = vunpack.c.h.b16 %v72
  %v227 = vunpack.c.l.b16 %v73
  %v228 = vunpack.c.h.b16 %v73
  %v229 = vunpack.c.l.b16 %v74
  %v230 = vunpack.c.h.b16 %v74
  %v231 = vunpack.c.l.b16 %v75
  %v232 = vunpack.c.h.b16 %v75
  %v233 = vunpack.c.l.b16 %v76
  %v234 = vunpack.c.h.b16 %v76
  %v235 = vunpack.c.l.b16 %v77
  %v236 = vunpack.c.h.b16 %v77
  %v237 = vunpack.c.l.b16 %v78
  %v238 = vunpack.c.h.b16 %v78
  %v239 = vunpack.c.l.b16 %v79
  %v240 = vunpack.c.h.b16 %v79
  %v241 = vunpack.c.l.b16 %v80
  %v242 = vunpack.c.h.b16 %v80
  %v243 = vpack.c.b16 %v149, %v147
  %v244 = vpack.c.b16 %v150, %v148
  %v245 = vpack.c.b16 %v153, %v151
  %v246 = vpack.c.b16 %v154, %v152
  %v247 = vpack.c.b16 %v157, %v155
  %v248 = vpack.c.b16 %v158, %v156
  %v249 = vpack.c.b16 %v161, %v159
  %v250 = vpack.c.b16 %v162, %v160
  %v251 = vpack.c.b16 %v165, %v163
  %v252 = vpack.c.b16 %v166, %v164
  %v253 = vpack.c.b16 %v169, %v167
  %v254 = vpack.c.b16 %v170, %v168
  %v255 = vpack.c.b16 %v173, %v171
  %v256 = vpack.c.b16 %v174, %v172
  %v257 = vpack.c.b16 %v177, %v175
  %v258 = vpack.c.b16 %v178, %v176
  %v259 = vpack.c.b16 %v181, %v179
  %v260 = vpack.c.b16 %v182, %v180
  %v261 = vpack.c.b16 %v185, %v183
  %v262 = vpack.c.b16 %v186, %v184
  %v263 = vpack.c.b16 %v189, %v187
  %v264 = vpack.c.b16 %v190, %v188
  %v265 = vpack.c.b16 %v193, %v191
  %v266 = vpack.c.b16 %v194, %v192
  %v267 = vpack.c.b16 %v197, %v195
  %v268 = vpack.c.b16 %v198, %v196
  %v269 = vpack.c.b16 %v201, %v199
  %v270 = vpack.c.b16 %v202, %v200
  %v271 = vpack.c.b16 %v205, %v203
  %v272 = vpack.c.b16 %v206, %v204
  %v273 = vpack.c.b16 %v209, %v207
  %v274 = vpack.c.b16 %v210, %v208
  %v275 = vpack.c.b16 %v213, %v211
  %v276 = vpack.c.b16 %v214, %v212
  %v277 = vpack.c.b16 %v217, %v215
  %v278 = vpack.c.b16 %v218, %v216
  %v279 = vpack.c.b16 %v221, %v219
  %v280 = vpack.c.b16 %v222, %v220
  %v281 = vpack.c.b16 %v225, %v223
  %v282 = vpack.c.b16 %v226, %v224
  %v283 = vpack.c.b16 %v229, %v227
  %v284 = vpack.c.b16 %v230, %v228
  %v285 = vpack.c.b16 %v233, %v231
  %v286 = vpack.c.b16 %v234, %v232
  %v287 = vpack.c.b16 %v237, %v235
  %v288 = vpack.c.b16 %v238, %v236
  %v289 = vpack.c.b16 %v241, %v239
  %v290 = vpack.c.b16 %v242, %v240
  %v333 = vunpack.c.l.b16 %v81
  %v334 = vunpack.c.h.b16 %v81
  %v335 = vunpack.c.l.b16 %v82
  %v336 = vunpack.c.h.b16 %v82
  %v337 = vunpack.c.l.b16 %v83
  %v338 = vunpack.c.h.b16 %v83
  %v339 = vunpack.c.l.b16 %v84
  %v340 = vunpack.c.h.b16 %v84
  %v341 = vunpack.c.l.b16 %v85
  %v342 = vunpack.c.h.b16 %v85
  %v343 = vunpack.c.l.b16 %v86
  %v344 = vunpack.c.h.b16 %v86
  %v345 = vunpack.c.l.b16 %v87
  %v346 = vunpack.c.h.b16 %v87
  %v347 = vunpack.c.l.b16 %v88
  %v348 = vunpack.c.h.b16 %v88
  %v349 = vunpack.c.l.b16 %v89
  %v350 = vunpack.c.h.b16 %v89
  %v351 = vunpack.c.l.b16 %v90
  %v352 = vunpack.c.h.b16 %v90
  %v353 = vunpack.c.l.b16 %v91
  %v354 = vunpack.c.h.b16 %v91
  %v355 = vunpack.c.l.b16 %v92
  %v356 = vunpack.c.h.b16 %v92
  %v357 = vunpack.c.l.b16 %v93
  %v358 = vunpack.c.h.b16 %v93
  %v359 = vunpack.c.l.b16 %v94
  %v360 = vunpack.c.h.b16 %v94
  %v361 = vunpack.c.l.b16 %v95
  %v362 = vunpack.c.h.b16 %v95
  %v363 = vunpack.c.l.b16 %v96
  %v364 = vunpack.c.h.b16 %v96
  %v365 = vunpack.c.l.b16 %v97
  %v366 = vunpack.c.h.b16 %v97
  %v367 = vunpack.c.l.b16 %v98
  %v368 = vunpack.c.h.b16 %v98
  %v369 = vpack.c.b16 %v335, %v333
  %v370 = vpack.c.b16 %v336, %v334
  %v371 = vpack.c.b16 %v339, %v337
  %v372 = vpack.c.b16 %v340, %v338
  %v373 = vpack.c.b16 %v343, %v341
  %v374 = vpack.c.b16 %v344, %v342
  %v375 = vpack.c.b16 %v347, %v345
  %v376 = vpack.c.b16 %v348, %v346
  %v377 = vpack.c.b16 %v351, %v349
  %v378 = vpack.c.b16 %v352, %v350
  %v379 = vpack.c.b16 %v355, %v353
  %v380 = vpack.c.b16 %v356, %v354
  %v381 = vpack.c.b16 %v359, %v357
  %v382 = vpack.c.b16 %v360, %v358
  %v383 = vpack.c.b16 %v363, %v361
  %v384 = vpack.c.b16 %v364, %v362
  %v385 = vpack.c.b16 %v367, %v365
  %v386 = vpack.c.b16 %v368, %v366
  %vm403 = vcmask 97280
  %v405 = vsel %vm403, %v244, 0
  %v408 = vsel %vm403, %v246, 0
  %v411 = vsel %vm403, %v248, 0
  %v414 = vsel %vm403, %v250, 0
  %v417 = vsel %vm403, %v252, 0
  %v420 = vsel %vm403, %v254, 0
  %v423 = vsel %vm403, %v256, 0
  %v426 = vsel %vm403, %v258, 0
  %v429 = vsel %vm403, %v260, 0
  %v432 = vsel %vm403, %v262, 0
  %v435 = vsel %vm403, %v264, 0
  %v438 = vsel %vm403, %v266, 0
  %v441 = vsel %vm403, %v268, 0
  %v444 = vsel %vm403, %v270, 0
  %v447 = vsel %vm403, %v272, 0
  %v450 = vsel %vm403, %v274, 0
  %v453 = vsel %vm403, %v276, 0
  %v456 = vsel %vm403, %v278, 0
  %v459 = vsel %vm403, %v280, 0
  %v462 = vsel %vm403, %v282, 0
  %v465 = vsel %vm403, %v284, 0
  %v468 = vsel %vm403, %v286, 0
  %v471 = vsel %vm403, %v288, 0
  %v474 = vsel %vm403, %v290, 0
  %vm476 = vcmask 1045504
  %v478 = vsel %vm476, %v385, 0
  %v481 = vsel %vm476, %v386, 0
  %483 = vmatprep.subr.bf16.mxu0 %v370
  %484 = vmatpush1.bf16.msra.mxu0 %v369
  %485 = vmatprep.subr.bf16.mxu0 %v372
  %486 = vmatpush1.bf16.msra.mxu0 %v371
  %487 = vmatprep.subr.bf16.mxu0 %v374
  %488 = vmatpush1.bf16.msra.mxu0 %v373
  %489 = vmatprep.subr.bf16.mxu0 %v376
  %490 = vmatpush1.bf16.msra.mxu0 %v375
  %491 = vmatprep.subr.bf16.mxu0 %v378
  %492 = vmatpush1.bf16.msra.mxu0 %v377
  %493 = vmatprep.subr.bf16.mxu0 %v380
  %494 = vmatpush1.bf16.msra.mxu0 %v379
  %495 = vmatprep.subr.bf16.mxu0 %v382
  %496 = vmatpush1.bf16.msra.mxu0 %v381
  %497 = vmatprep.subr.bf16.mxu0 %v384
  %498 = vmatpush1.bf16.msra.mxu0 %v383
  %499 = vmatprep.subr.bf16.mxu0 %v481
  %500 = vmatpush1.bf16.msra.mxu0 %v478
  %501 = vmatprep.subr.bf16.mxu0 0
  %502 = vmatpush1.bf16.msra.mxu0 0
  %503 = vmatprep.subr.bf16.mxu0 0
  %504 = vmatpush1.bf16.msra.mxu0 0
  %505 = vmatprep.subr.bf16.mxu0 0
  %506 = vmatpush1.bf16.msra.mxu0 0
  %507 = vmatprep.subr.bf16.mxu0 0
  %508 = vmatpush1.bf16.msra.mxu0 0
  %509 = vmatprep.subr.bf16.mxu0 0
  %510 = vmatpush1.bf16.msra.mxu0 0
  %511 = vmatprep.subr.bf16.mxu0 0
  %512 = vmatpush1.bf16.msra.mxu0 0
  %513 = vmatprep.subr.bf16.mxu0 0
  %514 = vmatpush1.bf16.msra.mxu0 0
  %515 = vmatprep.mubr.bf16.mxu0 %v405
  %516 = vmatmul.mubr.bf16.gmra.mrb[0].mxu0 %v243
  %v517 = vpop.f32.mrb[0].mxu0
  %v518 = vadd.f32 0.0, %v517
  %v519 = vpop.f32.mrb[0].mxu0
  %v520 = vadd.f32 0.0, %v519
  %v521 = vpop.f32.mrb[0].mxu0
  %v522 = vadd.f32 0.0, %v521
  %v523 = vpop.f32.mrb[0].mxu0
  %v524 = vadd.f32 0.0, %v523
  %525 = vmatprep.mubr.bf16.mxu0 %v408
  %526 = vmatmul.mubr.bf16.gmra.mrb[0].mxu0 %v245
  %v527 = vpop.f32.mrb[0].mxu0
  %v528 = vadd.f32 0.0, %v527
  %v529 = vpop.f32.mrb[0].mxu0
  %v530 = vadd.f32 0.0, %v529
  %v531 = vpop.f32.mrb[0].mxu0
  %v532 = vadd.f32 0.0, %v531
  %v533 = vpop.f32.mrb[0].mxu0
  %v534 = vadd.f32 0.0, %v533
  %535 = vmatprep.mubr.bf16.mxu0 %v411
  %536 = vmatmul.mubr.bf16.gmra.mrb[0].mxu0 %v247
  %v537 = vpop.f32.mrb[0].mxu0
  %v538 = vadd.f32 0.0, %v537
  %v539 = vpop.f32.mrb[0].mxu0
  %v540 = vadd.f32 0.0, %v539
  %v541 = vpop.f32.mrb[0].mxu0
  %v542 = vadd.f32 0.0, %v541
  %v543 = vpop.f32.mrb[0].mxu0
  %v544 = vadd.f32 0.0, %v543
  %545 = vmatprep.mubr.bf16.mxu0 %v414
  %546 = vmatmul.mubr.bf16.gmra.mrb[0].mxu0 %v249
  %v547 = vpop.f32.mrb[0].mxu0
  %v548 = vadd.f32 0.0, %v547
  %v549 = vpop.f32.mrb[0].mxu0
  %v550 = vadd.f32 0.0, %v549
  %v551 = vpop.f32.mrb[0].mxu0
  %v552 = vadd.f32 0.0, %v551
  %v553 = vpop.f32.mrb[0].mxu0
  %v554 = vadd.f32 0.0, %v553
  %555 = vmatprep.mubr.bf16.mxu0 %v417
  %556 = vmatmul.mubr.bf16.gmra.mrb[0].mxu0 %v251
  %v557 = vpop.f32.mrb[0].mxu0
  %v558 = vadd.f32 0.0, %v557
  %v559 = vpop.f32.mrb[0].mxu0
  %v560 = vadd.f32 0.0, %v559
  %v561 = vpop.f32.mrb[0].mxu0
  %v562 = vadd.f32 0.0, %v561
  %v563 = vpop.f32.mrb[0].mxu0
  %v564 = vadd.f32 0.0, %v563
  %565 = vmatprep.mubr.bf16.mxu0 %v420
  %566 = vmatmul.mubr.bf16.gmra.mrb[0].mxu0 %v253
  %v567 = vpop.f32.mrb[0].mxu0
  %v568 = vadd.f32 0.0, %v567
  %v569 = vpop.f32.mrb[0].mxu0
  %v570 = vadd.f32 0.0, %v569
  %v571 = vpop.f32.mrb[0].mxu0
  %v572 = vadd.f32 0.0, %v571
  %v573 = vpop.f32.mrb[0].mxu0
  %v574 = vadd.f32 0.0, %v573
  %575 = vmatprep.mubr.bf16.mxu0 %v423
  %576 = vmatmul.mubr.bf16.gmra.mrb[0].mxu0 %v255
  %v577 = vpop.f32.mrb[0].mxu0
  %v578 = vadd.f32 0.0, %v577
  %v579 = vpop.f32.mrb[0].mxu0
  %v580 = vadd.f32 0.0, %v579
  %v581 = vpop.f32.mrb[0].mxu0
  %v582 = vadd.f32 0.0, %v581
  %v583 = vpop.f32.mrb[0].mxu0
  %v584 = vadd.f32 0.0, %v583
  %585 = vmatprep.mubr.bf16.mxu0 %v426
  %586 = vmatmul.mubr.bf16.gmra.mrb[0].mxu0 %v257
  %v587 = vpop.f32.mrb[0].mxu0
  %v588 = vadd.f32 0.0, %v587
  %v589 = vpop.f32.mrb[0].mxu0
  %v590 = vadd.f32 0.0, %v589
  %v591 = vpop.f32.mrb[0].mxu0
  %v592 = vadd.f32 0.0, %v591
  %v593 = vpop.f32.mrb[0].mxu0
  %v594 = vadd.f32 0.0, %v593
  %595 = vmatprep.mubr.bf16.mxu0 %v429
  %596 = vmatmul.mubr.bf16.gmra.mrb[0].mxu0 %v259
  %v597 = vpop.f32.mrb[0].mxu0
  %v598 = vadd.f32 0.0, %v597
  %v599 = vpop.f32.mrb[0].mxu0
  %v600 = vadd.f32 0.0, %v599
  %v601 = vpop.f32.mrb[0].mxu0
  %v602 = vadd.f32 0.0, %v601
  %v603 = vpop.f32.mrb[0].mxu0
  %v604 = vadd.f32 0.0, %v603
  %605 = vmatprep.mubr.bf16.mxu0 %v432
  %606 = vmatmul.mubr.bf16.gmra.mrb[0].mxu0 %v261
  %v607 = vpop.f32.mrb[0].mxu0
  %v608 = vadd.f32 0.0, %v607
  %v609 = vpop.f32.mrb[0].mxu0
  %v610 = vadd.f32 0.0, %v609
  %v611 = vpop.f32.mrb[0].mxu0
  %v612 = vadd.f32 0.0, %v611
  %v613 = vpop.f32.mrb[0].mxu0
  %v614 = vadd.f32 0.0, %v613
  %615 = vmatprep.mubr.bf16.mxu0 %v435
  %616 = vmatmul.mubr.bf16.gmra.mrb[0].mxu0 %v263
  %v617 = vpop.f32.mrb[0].mxu0
  %v618 = vadd.f32 0.0, %v617
  %v619 = vpop.f32.mrb[0].mxu0
  %v620 = vadd.f32 0.0, %v619
  %v621 = vpop.f32.mrb[0].mxu0
  %v622 = vadd.f32 0.0, %v621
  %v623 = vpop.f32.mrb[0].mxu0
  %v624 = vadd.f32 0.0, %v623
  %625 = vmatprep.mubr.bf16.mxu0 %v438
  %626 = vmatmul.mubr.bf16.gmra.mrb[0].mxu0 %v265
  %v627 = vpop.f32.mrb[0].mxu0
  %v628 = vadd.f32 0.0, %v627
  %v629 = vpop.f32.mrb[0].mxu0
  %v630 = vadd.f32 0.0, %v629
  %v631 = vpop.f32.mrb[0].mxu0
  %v632 = vadd.f32 0.0, %v631
  %v633 = vpop.f32.mrb[0].mxu0
  %v634 = vadd.f32 0.0, %v633
  %635 = vmatprep.mubr.bf16.mxu0 %v441
  %636 = vmatmul.mubr.bf16.gmra.mrb[0].mxu0 %v267
  %v637 = vpop.f32.mrb[0].mxu0
  %v638 = vadd.f32 0.0, %v637
  %v639 = vpop.f32.mrb[0].mxu0
  %v640 = vadd.f32 0.0, %v639
  %v641 = vpop.f32.mrb[0].mxu0
  %v642 = vadd.f32 0.0, %v641
  %v643 = vpop.f32.mrb[0].mxu0
  %v644 = vadd.f32 0.0, %v643
  %645 = vmatprep.mubr.bf16.mxu0 %v444
  %646 = vmatmul.mubr.bf16.gmra.mrb[0].mxu0 %v269
  %v647 = vpop.f32.mrb[0].mxu0
  %v648 = vadd.f32 0.0, %v647
  %v649 = vpop.f32.mrb[0].mxu0
  %v650 = vadd.f32 0.0, %v649
  %v651 = vpop.f32.mrb[0].mxu0
  %v652 = vadd.f32 0.0, %v651
  %v653 = vpop.f32.mrb[0].mxu0
  %v654 = vadd.f32 0.0, %v653
  %655 = vmatprep.mubr.bf16.mxu0 %v447
  %656 = vmatmul.mubr.bf16.gmra.mrb[0].mxu0 %v271
  %v657 = vpop.f32.mrb[0].mxu0
  %v658 = vadd.f32 0.0, %v657
  %v659 = vpop.f32.mrb[0].mxu0
  %v660 = vadd.f32 0.0, %v659
  %v661 = vpop.f32.mrb[0].mxu0
  %v662 = vadd.f32 0.0, %v661
  %v663 = vpop.f32.mrb[0].mxu0
  %v664 = vadd.f32 0.0, %v663
  %665 = vmatprep.mubr.bf16.mxu0 %v450
  %666 = vmatmul.mubr.bf16.gmra.mrb[0].mxu0 %v273
  %v667 = vpop.f32.mrb[0].mxu0
  %v668 = vadd.f32 0.0, %v667
  %v669 = vpop.f32.mrb[0].mxu0
  %v670 = vadd.f32 0.0, %v669
  %v671 = vpop.f32.mrb[0].mxu0
  %v672 = vadd.f32 0.0, %v671
  %v673 = vpop.f32.mrb[0].mxu0
  %v674 = vadd.f32 0.0, %v673
  %675 = vmatprep.mubr.bf16.mxu0 %v453
  %676 = vmatmul.mubr.bf16.gmra.mrb[0].mxu0 %v275
  %v677 = vpop.f32.mrb[0].mxu0
  %v678 = vadd.f32 0.0, %v677
  %v679 = vpop.f32.mrb[0].mxu0
  %v680 = vadd.f32 0.0, %v679
  %v681 = vpop.f32.mrb[0].mxu0
  %v682 = vadd.f32 0.0, %v681
  %v683 = vpop.f32.mrb[0].mxu0
  %v684 = vadd.f32 0.0, %v683
  %685 = vmatprep.mubr.bf16.mxu0 %v456
  %686 = vmatmul.mubr.bf16.gmra.mrb[0].mxu0 %v277
  %v687 = vpop.f32.mrb[0].mxu0
  %v688 = vadd.f32 0.0, %v687
  %v689 = vpop.f32.mrb[0].mxu0
  %v690 = vadd.f32 0.0, %v689
  %v691 = vpop.f32.mrb[0].mxu0
  %v692 = vadd.f32 0.0, %v691
  %v693 = vpop.f32.mrb[0].mxu0
  %v694 = vadd.f32 0.0, %v693
  %695 = vmatprep.mubr.bf16.mxu0 %v459
  %696 = vmatmul.mubr.bf16.gmra.mrb[0].mxu0 %v279
  %v697 = vpop.f32.mrb[0].mxu0
  %v698 = vadd.f32 0.0, %v697
  %v699 = vpop.f32.mrb[0].mxu0
  %v700 = vadd.f32 0.0, %v699
  %v701 = vpop.f32.mrb[0].mxu0
  %v702 = vadd.f32 0.0, %v701
  %v703 = vpop.f32.mrb[0].mxu0
  %v704 = vadd.f32 0.0, %v703
  %705 = vmatprep.mubr.bf16.mxu0 %v462
  %706 = vmatmul.mubr.bf16.gmra.mrb[0].mxu0 %v281
  %v707 = vpop.f32.mrb[0].mxu0
  %v708 = vadd.f32 0.0, %v707
  %v709 = vpop.f32.mrb[0].mxu0
  %v710 = vadd.f32 0.0, %v709
  %v711 = vpop.f32.mrb[0].mxu0
  %v712 = vadd.f32 0.0, %v711
  %v713 = vpop.f32.mrb[0].mxu0
  %v714 = vadd.f32 0.0, %v713
  %715 = vmatprep.mubr.bf16.mxu0 %v465
  %716 = vmatmul.mubr.bf16.gmra.mrb[0].mxu0 %v283
  %v717 = vpop.f32.mrb[0].mxu0
  %v718 = vadd.f32 0.0, %v717
  %v719 = vpop.f32.mrb[0].mxu0
  %v720 = vadd.f32 0.0, %v719
  %v721 = vpop.f32.mrb[0].mxu0
  %v722 = vadd.f32 0.0, %v721
  %v723 = vpop.f32.mrb[0].mxu0
  %v724 = vadd.f32 0.0, %v723
  %725 = vmatprep.mubr.bf16.mxu0 %v468
  %726 = vmatmul.mubr.bf16.gmra.mrb[0].mxu0 %v285
  %v727 = vpop.f32.mrb[0].mxu0
  %v728 = vadd.f32 0.0, %v727
  %v729 = vpop.f32.mrb[0].mxu0
  %v730 = vadd.f32 0.0, %v729
  %v731 = vpop.f32.mrb[0].mxu0
  %v732 = vadd.f32 0.0, %v731
  %v733 = vpop.f32.mrb[0].mxu0
  %v734 = vadd.f32 0.0, %v733
  %735 = vmatprep.mubr.bf16.mxu0 %v471
  %736 = vmatmul.mubr.bf16.gmra.mrb[0].mxu0 %v287
  %v737 = vpop.f32.mrb[0].mxu0
  %v738 = vadd.f32 0.0, %v737
  %v739 = vpop.f32.mrb[0].mxu0
  %v740 = vadd.f32 0.0, %v739
  %v741 = vpop.f32.mrb[0].mxu0
  %v742 = vadd.f32 0.0, %v741
  %v743 = vpop.f32.mrb[0].mxu0
  %v744 = vadd.f32 0.0, %v743
  %745 = vmatprep.mubr.bf16.mxu0 %v474
  %746 = vmatmul.mubr.bf16.gmra.mrb[0].mxu0 %v289
  %v747 = vpop.f32.mrb[0].mxu0
  %v748 = vadd.f32 0.0, %v747
  %v749 = vpop.f32.mrb[0].mxu0
  %v750 = vadd.f32 0.0, %v749
  %v751 = vpop.f32.mrb[0].mxu0
  %v752 = vadd.f32 0.0, %v751
  %v753 = vpop.f32.mrb[0].mxu0
  %v754 = vadd.f32 0.0, %v753
  %755 = vdwg.mxu0
  %v756 = vmax.f32 %v518, %v520
  %v757 = vmax.f32 %v522, %v524
  %v758 = vmax.f32 %v528, %v530
  %v759 = vmax.f32 %v532, %v534
  %v760 = vmax.f32 %v538, %v540
  %v761 = vmax.f32 %v542, %v544
  %v762 = vmax.f32 %v548, %v550
  %v763 = vmax.f32 %v552, %v554
  %v764 = vmax.f32 %v558, %v560
  %v765 = vmax.f32 %v562, %v564
  %v766 = vmax.f32 %v568, %v570
  %v767 = vmax.f32 %v572, %v574
  %v768 = vmax.f32 %v578, %v580
  %v769 = vmax.f32 %v582, %v584
  %v770 = vmax.f32 %v588, %v590
  %v771 = vmax.f32 %v592, %v594
  %v772 = vmax.f32 %v598, %v600
  %v773 = vmax.f32 %v602, %v604
  %v774 = vmax.f32 %v608, %v610
  %v775 = vmax.f32 %v612, %v614
  %v776 = vmax.f32 %v618, %v620
  %v777 = vmax.f32 %v622, %v624
  %v778 = vmax.f32 %v628, %v630
  %v779 = vmax.f32 %v632, %v634
  %v780 = vmax.f32 %v638, %v640
  %v781 = vmax.f32 %v642, %v644
  %v782 = vmax.f32 %v648, %v650
  %v783 = vmax.f32 %v652, %v654
  %v784 = vmax.f32 %v658, %v660
  %v785 = vmax.f32 %v662, %v664
  %v786 = vmax.f32 %v668, %v670
  %v787 = vmax.f32 %v672, %v674
  %v788 = vmax.f32 %v678, %v680
  %v789 = vmax.f32 %v682, %v684
  %v790 = vmax.f32 %v688, %v690
  %v791 = vmax.f32 %v692, %v694
  %v792 = vmax.f32 %v698, %v700
  %v793 = vmax.f32 %v702, %v704
  %v794 = vmax.f32 %v708, %v710
  %v795 = vmax.f32 %v712, %v714
  %v796 = vmax.f32 %v718, %v720
  %v797 = vmax.f32 %v722, %v724
  %v798 = vmax.f32 %v728, %v730
  %v799 = vmax.f32 %v732, %v734
  %v800 = vmax.f32 %v738, %v740
  %v801 = vmax.f32 %v742, %v744
  %v802 = vmax.f32 %v748, %v750
  %v803 = vmax.f32 %v752, %v754
  %v804 = vld [vmem:[%s2] sm:$0x1]
  %v805 = vmax.f32 %v756, %v758
  %v806 = vmax.f32 %v757, %v759
  %v808 = vlaneseq
  %v809 = vshrl.u32 %v808, 7
  %v810 = vsub.s32 0, %v809
  %v811 = vrot.slane %v804, %v810
  %v813 = vadd.f32 %v805, %v811
  %v814 = vadd.f32 %v806, %v811
  %v815 = vmax.f32 %v813, 0.0
  %v816 = vmax.f32 %v814, 0.0
  %v817 = vpack.c.bf16 %v816, %v815
  %v818 = vmax.f32 %v760, %v762
  %v819 = vmax.f32 %v761, %v763
  %v820 = vadd.f32 %v818, %v811
  %v821 = vadd.f32 %v819, %v811
  %v822 = vmax.f32 %v820, 0.0
  %v823 = vmax.f32 %v821, 0.0
  %v824 = vpack.c.bf16 %v823, %v822
  %v825 = vmax.f32 %v764, %v766
  %v826 = vmax.f32 %v765, %v767
  %v827 = vadd.f32 %v825, %v811
  %v828 = vadd.f32 %v826, %v811
  %v829 = vmax.f32 %v827, 0.0
  %v830 = vmax.f32 %v828, 0.0
  %v831 = vpack.c.bf16 %v830, %v829
  %v832 = vmax.f32 %v768, %v770
  %v833 = vmax.f32 %v769, %v771
  %v834 = vadd.f32 %v832, %v811
  %v835 = vadd.f32 %v833, %v811
  %v836 = vmax.f32 %v834, 0.0
  %v837 = vmax.f32 %v835, 0.0
  %v838 = vpack.c.bf16 %v837, %v836
  %v839 = vmax.f32 %v772, %v774
  %v840 = vmax.f32 %v773, %v775
  %v841 = vadd.f32 %v839, %v811
  %v842 = vadd.f32 %v840, %v811
  %v843 = vmax.f32 %v841, 0.0
  %v844 = vmax.f32 %v842, 0.0
  %v845 = vpack.c.bf16 %v844, %v843
  %v846 = vmax.f32 %v776, %v778
  %v847 = vmax.f32 %v777, %v779
  %v848 = vadd.f32 %v846, %v811
  %v849 = vadd.f32 %v847, %v811
  %v850 = vmax.f32 %v848, 0.0
  %v851 = vmax.f32 %v849, 0.0
  %v852 = vpack.c.bf16 %v851, %v850
  %v853 = vmax.f32 %v780, %v782
  %v854 = vmax.f32 %v781, %v783
  %v855 = vadd.f32 %v853, %v811
  %v856 = vadd.f32 %v854, %v811
  %v857 = vmax.f32 %v855, 0.0
  %v858 = vmax.f32 %v856, 0.0
  %v859 = vpack.c.bf16 %v858, %v857
  %v860 = vmax.f32 %v784, %v786
  %v861 = vmax.f32 %v785, %v787
  %v862 = vadd.f32 %v860, %v811
  %v863 = vadd.f32 %v861, %v811
  %v864 = vmax.f32 %v862, 0.0
  %v865 = vmax.f32 %v863, 0.0
  %v866 = vpack.c.bf16 %v865, %v864
  %v867 = vmax.f32 %v788, %v790
  %v868 = vmax.f32 %v789, %v791
  %v869 = vadd.f32 %v867, %v811
  %v870 = vadd.f32 %v868, %v811
  %v871 = vmax.f32 %v869, 0.0
  %v872 = vmax.f32 %v870, 0.0
  %v873 = vpack.c.bf16 %v872, %v871
  %v874 = vmax.f32 %v792, %v794
  %v875 = vmax.f32 %v793, %v795
  %v876 = vadd.f32 %v874, %v811
  %v877 = vadd.f32 %v875, %v811
  %v878 = vmax.f32 %v876, 0.0
  %v879 = vmax.f32 %v877, 0.0
  %v880 = vpack.c.bf16 %v879, %v878
  %v881 = vmax.f32 %v796, %v798
  %v882 = vmax.f32 %v797, %v799
  %v883 = vadd.f32 %v881, %v811
  %v884 = vadd.f32 %v882, %v811
  %v885 = vmax.f32 %v883, 0.0
  %v886 = vmax.f32 %v884, 0.0
  %v887 = vpack.c.bf16 %v886, %v885
  %v888 = vmax.f32 %v800, %v802
  %v889 = vmax.f32 %v801, %v803
  %v890 = vadd.f32 %v888, %v811
  %v891 = vadd.f32 %v889, %v811
  %v892 = vmax.f32 %v890, 0.0
  %v893 = vmax.f32 %v891, 0.0
  %v894 = vpack.c.bf16 %v893, %v892
  %v895 = vld [vmem:[%s3] sm:$0xff]
  %v896 = vld [vmem:[%s3 + $0x8] sm:$0xff]
  %v897 = vld [vmem:[%s3 + $0x10] sm:$0xff]
  %v898 = vld [vmem:[%s3 + $0x18] sm:$0xff]
  %v899 = vld [vmem:[%s3 + $0x20] sm:$0xff]
  %v900 = vld [vmem:[%s3 + $0x28] sm:$0xff]
  %v901 = vld [vmem:[%s3 + $0x30] sm:$0xff]
  %v902 = vld [vmem:[%s3 + $0x38] sm:$0xff]
  %v903 = vld [vmem:[%s3 + $0x40] sm:$0xff]
  %v904 = vld [vmem:[%s3 + $0x48] sm:$0xff]
  %v905 = vld [vmem:[%s3 + $0x50] sm:$0xff]
  %v906 = vld [vmem:[%s3 + $0x58] sm:$0xff]
  %v907 = vld [vmem:[%s3 + $0x60] sm:$0xff]
  %v908 = vld [vmem:[%s3 + $0x68] sm:$0xff]
  %v909 = vld [vmem:[%s3 + $0x70] sm:$0xff]
  %v910 = vld [vmem:[%s3 + $0x78] sm:$0xff]
  %v911 = vld [vmem:[%s3 + $0x80] sm:$0xff]
  %v912 = vld [vmem:[%s3 + $0x88] sm:$0xff]
  %v913 = vld [vmem:[%s3 + $0x90] sm:$0xff]
  %v914 = vld [vmem:[%s3 + $0x98] sm:$0xff]
  %v915 = vld [vmem:[%s3 + $0xa0] sm:$0xff]
  %v916 = vld [vmem:[%s3 + $0xa8] sm:$0xff]
  %v917 = vld [vmem:[%s3 + $0xb0] sm:$0xff]
  %v918 = vld [vmem:[%s3 + $0xb8] sm:$0xff]
  %v919 = vld [vmem:[%s3 + $0xc0] sm:$0xff]
  %v920 = vld [vmem:[%s3 + $0xc8] sm:$0xff]
  %v921 = vld [vmem:[%s3 + $0xd0] sm:$0xff]
  %v922 = vld [vmem:[%s3 + $0xd8] sm:$0xff]
  %v923 = vld [vmem:[%s3 + $0xe0] sm:$0xff]
  %v924 = vld [vmem:[%s3 + $0xe8] sm:$0xff]
  %v925 = vld [vmem:[%s3 + $0xf0] sm:$0xff]
  %v926 = vld [vmem:[%s3 + $0xf8] sm:$0xff]
  %v927 = vld [vmem:[%s3 + $0x100] sm:$0xff]
  %v928 = vld [vmem:[%s3 + $0x108] sm:$0xff]
  %v929 = vld [vmem:[%s3 + $0x110] sm:$0xff]
  %v930 = vld [vmem:[%s3 + $0x118] sm:$0xff]
  %v931 = vld [vmem:[%s3 + $0x120] sm:$0xff]
  %v932 = vld [vmem:[%s3 + $0x128] sm:$0xff]
  %v933 = vld [vmem:[%s3 + $0x130] sm:$0xff]
  %v934 = vld [vmem:[%s3 + $0x138] sm:$0xff]
  %v935 = vld [vmem:[%s3 + $0x140] sm:$0xff]
  %v936 = vld [vmem:[%s3 + $0x148] sm:$0xff]
  %v937 = vld [vmem:[%s3 + $0x150] sm:$0xff]
  %v938 = vld [vmem:[%s3 + $0x158] sm:$0xff]
  %v939 = vld [vmem:[%s3 + $0x160] sm:$0xff]
  %v940 = vld [vmem:[%s3 + $0x168] sm:$0xff]
  %v941 = vld [vmem:[%s3 + $0x170] sm:$0xff]
  %v942 = vld [vmem:[%s3 + $0x178] sm:$0xff]
  %v943 = vld [vmem:[%s3 + $0x180] sm:$0xff]
  %v944 = vld [vmem:[%s3 + $0x188] sm:$0xff]
  %v945 = vld [vmem:[%s3 + $0x190] sm:$0xff]
  %v946 = vld [vmem:[%s3 + $0x198] sm:$0xff]
  %v947 = vld [vmem:[%s3 + $0x1a0] sm:$0xff]
  %v948 = vld [vmem:[%s3 + $0x1a8] sm:$0xff]
  %v949 = vld [vmem:[%s3 + $0x1b0] sm:$0xff]
  %v950 = vld [vmem:[%s3 + $0x1b8] sm:$0xff]
  %v951 = vld [vmem:[%s3 + $0x1c0] sm:$0xff]
  %v952 = vld [vmem:[%s3 + $0x1c8] sm:$0xff]
  %v953 = vld [vmem:[%s3 + $0x1d0] sm:$0xff]
  %v954 = vld [vmem:[%s3 + $0x1d8] sm:$0xff]
  %v955 = vld [vmem:[%s3 + $0x1e0] sm:$0xff]
  %v956 = vld [vmem:[%s3 + $0x1e8] sm:$0xff]
  %v957 = vld [vmem:[%s3 + $0x1f0] sm:$0xff]
  %v958 = vld [vmem:[%s3 + $0x1f8] sm:$0xff]
  %v959 = vld [vmem:[%s3 + $0x200] sm:$0xff]
  %v960 = vld [vmem:[%s3 + $0x208] sm:$0xff]
  %v961 = vld [vmem:[%s3 + $0x210] sm:$0xff]
  %v962 = vld [vmem:[%s3 + $0x218] sm:$0xff]
  %v963 = vld [vmem:[%s3 + $0x220] sm:$0xff]
  %v964 = vld [vmem:[%s3 + $0x228] sm:$0xff]
  %v965 = vld [vmem:[%s3 + $0x230] sm:$0xff]
  %v966 = vld [vmem:[%s3 + $0x238] sm:$0xff]
  %v967 = vld [vmem:[%s3 + $0x240] sm:$0xff]
  %v968 = vld [vmem:[%s3 + $0x248] sm:$0xff]
  %v969 = vld [vmem:[%s3 + $0x250] sm:$0xff]
  %v970 = vld [vmem:[%s3 + $0x258] sm:$0xff]
  %v971 = vld [vmem:[%s3 + $0x260] sm:$0xff]
  %v972 = vld [vmem:[%s3 + $0x268] sm:$0xff]
  %v973 = vld [vmem:[%s3 + $0x270] sm:$0xff]
  %v974 = vld [vmem:[%s3 + $0x278] sm:$0xff]
  %v1055 = vunpack.c.l.b16 %v895
  %v1056 = vunpack.c.h.b16 %v895
  %v1057 = vunpack.c.l.b16 %v896
  %v1058 = vunpack.c.h.b16 %v896
  %v1059 = vunpack.c.l.b16 %v897
  %v1060 = vunpack.c.h.b16 %v897
  %v1061 = vunpack.c.l.b16 %v898
  %v1062 = vunpack.c.h.b16 %v898
  %v1063 = vunpack.c.l.b16 %v899
  %v1064 = vunpack.c.h.b16 %v899
  %v1065 = vunpack.c.l.b16 %v900
  %v1066 = vunpack.c.h.b16 %v900
  %v1067 = vunpack.c.l.b16 %v901
  %v1068 = vunpack.c.h.b16 %v901
  %v1069 = vunpack.c.l.b16 %v902
  %v1070 = vunpack.c.h.b16 %v902
  %v1071 = vunpack.c.l.b16 %v903
  %v1072 = vunpack.c.h.b16 %v903
  %v1073 = vunpack.c.l.b16 %v904
  %v1074 = vunpack.c.h.b16 %v904
  %v1075 = vunpack.c.l.b16 %v905
  %v1076 = vunpack.c.h.b16 %v905
  %v1077 = vunpack.c.l.b16 %v906
  %v1078 = vunpack.c.h.b16 %v906
  %v1079 = vunpack.c.l.b16 %v907
  %v1080 = vunpack.c.h.b16 %v907
  %v1081 = vunpack.c.l.b16 %v908
  %v1082 = vunpack.c.h.b16 %v908
  %v1083 = vunpack.c.l.b16 %v909
  %v1084 = vunpack.c.h.b16 %v909
  %v1085 = vunpack.c.l.b16 %v910
  %v1086 = vunpack.c.h.b16 %v910
  %v1087 = vunpack.c.l.b16 %v911
  %v1088 = vunpack.c.h.b16 %v911
  %v1089 = vunpack.c.l.b16 %v912
  %v1090 = vunpack.c.h.b16 %v912
  %v1091 = vunpack.c.l.b16 %v913
  %v1092 = vunpack.c.h.b16 %v913
  %v1093 = vunpack.c.l.b16 %v914
  %v1094 = vunpack.c.h.b16 %v914
  %v1095 = vunpack.c.l.b16 %v915
  %v1096 = vunpack.c.h.b16 %v915
  %v1097 = vunpack.c.l.b16 %v916
  %v1098 = vunpack.c.h.b16 %v916
  %v1099 = vunpack.c.l.b16 %v917
  %v1100 = vunpack.c.h.b16 %v917
  %v1101 = vunpack.c.l.b16 %v918
  %v1102 = vunpack.c.h.b16 %v918
  %v1103 = vunpack.c.l.b16 %v919
  %v1104 = vunpack.c.h.b16 %v919
  %v1105 = vunpack.c.l.b16 %v920
  %v1106 = vunpack.c.h.b16 %v920
  %v1107 = vunpack.c.l.b16 %v921
  %v1108 = vunpack.c.h.b16 %v921
  %v1109 = vunpack.c.l.b16 %v922
  %v1110 = vunpack.c.h.b16 %v922
  %v1111 = vunpack.c.l.b16 %v923
  %v1112 = vunpack.c.h.b16 %v923
  %v1113 = vunpack.c.l.b16 %v924
  %v1114 = vunpack.c.h.b16 %v924
  %v1115 = vunpack.c.l.b16 %v925
  %v1116 = vunpack.c.h.b16 %v925
  %v1117 = vunpack.c.l.b16 %v926
  %v1118 = vunpack.c.h.b16 %v926
  %v1119 = vunpack.c.l.b16 %v927
  %v1120 = vunpack.c.h.b16 %v927
  %v1121 = vunpack.c.l.b16 %v928
  %v1122 = vunpack.c.h.b16 %v928
  %v1123 = vunpack.c.l.b16 %v929
  %v1124 = vunpack.c.h.b16 %v929
  %v1125 = vunpack.c.l.b16 %v930
  %v1126 = vunpack.c.h.b16 %v930
  %v1127 = vunpack.c.l.b16 %v931
  %v1128 = vunpack.c.h.b16 %v931
  %v1129 = vunpack.c.l.b16 %v932
  %v1130 = vunpack.c.h.b16 %v932
  %v1131 = vunpack.c.l.b16 %v933
  %v1132 = vunpack.c.h.b16 %v933
  %v1133 = vunpack.c.l.b16 %v934
  %v1134 = vunpack.c.h.b16 %v934
  %v1135 = vunpack.c.l.b16 %v935
  %v1136 = vunpack.c.h.b16 %v935
  %v1137 = vunpack.c.l.b16 %v936
  %v1138 = vunpack.c.h.b16 %v936
  %v1139 = vunpack.c.l.b16 %v937
  %v1140 = vunpack.c.h.b16 %v937
  %v1141 = vunpack.c.l.b16 %v938
  %v1142 = vunpack.c.h.b16 %v938
  %v1143 = vunpack.c.l.b16 %v939
  %v1144 = vunpack.c.h.b16 %v939
  %v1145 = vunpack.c.l.b16 %v940
  %v1146 = vunpack.c.h.b16 %v940
  %v1147 = vunpack.c.l.b16 %v941
  %v1148 = vunpack.c.h.b16 %v941
  %v1149 = vunpack.c.l.b16 %v942
  %v1150 = vunpack.c.h.b16 %v942
  %v1151 = vunpack.c.l.b16 %v943
  %v1152 = vunpack.c.h.b16 %v943
  %v1153 = vunpack.c.l.b16 %v944
  %v1154 = vunpack.c.h.b16 %v944
  %v1155 = vunpack.c.l.b16 %v945
  %v1156 = vunpack.c.h.b16 %v945
  %v1157 = vunpack.c.l.b16 %v946
  %v1158 = vunpack.c.h.b16 %v946
  %v1159 = vunpack.c.l.b16 %v947
  %v1160 = vunpack.c.h.b16 %v947
  %v1161 = vunpack.c.l.b16 %v948
  %v1162 = vunpack.c.h.b16 %v948
  %v1163 = vunpack.c.l.b16 %v949
  %v1164 = vunpack.c.h.b16 %v949
  %v1165 = vunpack.c.l.b16 %v950
  %v1166 = vunpack.c.h.b16 %v950
  %v1167 = vunpack.c.l.b16 %v951
  %v1168 = vunpack.c.h.b16 %v951
  %v1169 = vunpack.c.l.b16 %v952
  %v1170 = vunpack.c.h.b16 %v952
  %v1171 = vunpack.c.l.b16 %v953
  %v1172 = vunpack.c.h.b16 %v953
  %v1173 = vunpack.c.l.b16 %v954
  %v1174 = vunpack.c.h.b16 %v954
  %v1175 = vunpack.c.l.b16 %v955
  %v1176 = vunpack.c.h.b16 %v955
  %v1177 = vunpack.c.l.b16 %v956
  %v1178 = vunpack.c.h.b16 %v956
  %v1179 = vunpack.c.l.b16 %v957
  %v1180 = vunpack.c.h.b16 %v957
  %v1181 = vunpack.c.l.b16 %v958
  %v1182 = vunpack.c.h.b16 %v958
  %v1183 = vunpack.c.l.b16 %v959
  %v1184 = vunpack.c.h.b16 %v959
  %v1185 = vunpack.c.l.b16 %v960
  %v1186 = vunpack.c.h.b16 %v960
  %v1187 = vunpack.c.l.b16 %v961
  %v1188 = vunpack.c.h.b16 %v961
  %v1189 = vunpack.c.l.b16 %v962
  %v1190 = vunpack.c.h.b16 %v962
  %v1191 = vunpack.c.l.b16 %v963
  %v1192 = vunpack.c.h.b16 %v963
  %v1193 = vunpack.c.l.b16 %v964
  %v1194 = vunpack.c.h.b16 %v964
  %v1195 = vunpack.c.l.b16 %v965
  %v1196 = vunpack.c.h.b16 %v965
  %v1197 = vunpack.c.l.b16 %v966
  %v1198 = vunpack.c.h.b16 %v966
  %v1199 = vunpack.c.l.b16 %v967
  %v1200 = vunpack.c.h.b16 %v967
  %v1201 = vunpack.c.l.b16 %v968
  %v1202 = vunpack.c.h.b16 %v968
  %v1203 = vunpack.c.l.b16 %v969
  %v1204 = vunpack.c.h.b16 %v969
  %v1205 = vunpack.c.l.b16 %v970
  %v1206 = vunpack.c.h.b16 %v970
  %v1207 = vunpack.c.l.b16 %v971
  %v1208 = vunpack.c.h.b16 %v971
  %v1209 = vunpack.c.l.b16 %v972
  %v1210 = vunpack.c.h.b16 %v972
  %v1211 = vunpack.c.l.b16 %v973
  %v1212 = vunpack.c.h.b16 %v973
  %v1213 = vunpack.c.l.b16 %v974
  %v1214 = vunpack.c.h.b16 %v974
  %v1215 = vpack.c.b16 %v1057, %v1055
  %v1216 = vpack.c.b16 %v1058, %v1056
  %v1217 = vpack.c.b16 %v1061, %v1059
  %v1218 = vpack.c.b16 %v1062, %v1060
  %v1219 = vpack.c.b16 %v1065, %v1063
  %v1220 = vpack.c.b16 %v1066, %v1064
  %v1221 = vpack.c.b16 %v1069, %v1067
  %v1222 = vpack.c.b16 %v1070, %v1068
  %v1223 = vpack.c.b16 %v1073, %v1071
  %v1224 = vpack.c.b16 %v1074, %v1072
  %v1225 = vpack.c.b16 %v1077, %v1075
  %v1226 = vpack.c.b16 %v1078, %v1076
  %v1227 = vpack.c.b16 %v1081, %v1079
  %v1228 = vpack.c.b16 %v1082, %v1080
  %v1229 = vpack.c.b16 %v1085, %v1083
  %v1230 = vpack.c.b16 %v1086, %v1084
  %v1231 = vpack.c.b16 %v1089, %v1087
  %v1232 = vpack.c.b16 %v1090, %v1088
  %v1233 = vpack.c.b16 %v1093, %v1091
  %v1234 = vpack.c.b16 %v1094, %v1092
  %v1235 = vpack.c.b16 %v1097, %v1095
  %v1236 = vpack.c.b16 %v1098, %v1096
  %v1237 = vpack.c.b16 %v1101, %v1099
  %v1238 = vpack.c.b16 %v1102, %v1100
  %v1239 = vpack.c.b16 %v1105, %v1103
  %v1240 = vpack.c.b16 %v1106, %v1104
  %v1241 = vpack.c.b16 %v1109, %v1107
  %v1242 = vpack.c.b16 %v1110, %v1108
  %v1243 = vpack.c.b16 %v1113, %v1111
  %v1244 = vpack.c.b16 %v1114, %v1112
  %v1245 = vpack.c.b16 %v1117, %v1115
  %v1246 = vpack.c.b16 %v1118, %v1116
  %v1247 = vpack.c.b16 %v1121, %v1119
  %v1248 = vpack.c.b16 %v1122, %v1120
  %v1249 = vpack.c.b16 %v1125, %v1123
  %v1250 = vpack.c.b16 %v1126, %v1124
  %v1251 = vpack.c.b16 %v1129, %v1127
  %v1252 = vpack.c.b16 %v1130, %v1128
  %v1253 = vpack.c.b16 %v1133, %v1131
  %v1254 = vpack.c.b16 %v1134, %v1132
  %v1255 = vpack.c.b16 %v1137, %v1135
  %v1256 = vpack.c.b16 %v1138, %v1136
  %v1257 = vpack.c.b16 %v1141, %v1139
  %v1258 = vpack.c.b16 %v1142, %v1140
  %v1259 = vpack.c.b16 %v1145, %v1143
  %v1260 = vpack.c.b16 %v1146, %v1144
  %v1261 = vpack.c.b16 %v1149, %v1147
  %v1262 = vpack.c.b16 %v1150, %v1148
  %v1263 = vpack.c.b16 %v1153, %v1151
  %v1264 = vpack.c.b16 %v1154, %v1152
  %v1265 = vpack.c.b16 %v1157, %v1155
  %v1266 = vpack.c.b16 %v1158, %v1156
  %v1267 = vpack.c.b16 %v1161, %v1159
  %v1268 = vpack.c.b16 %v1162, %v1160
  %v1269 = vpack.c.b16 %v1165, %v1163
  %v1270 = vpack.c.b16 %v1166, %v1164
  %v1271 = vpack.c.b16 %v1169, %v1167
  %v1272 = vpack.c.b16 %v1170, %v1168
  %v1273 = vpack.c.b16 %v1173, %v1171
  %v1274 = vpack.c.b16 %v1174, %v1172
  %v1275 = vpack.c.b16 %v1177, %v1175
  %v1276 = vpack.c.b16 %v1178, %v1176
  %v1277 = vpack.c.b16 %v1181, %v1179
  %v1278 = vpack.c.b16 %v1182, %v1180
  %v1279 = vpack.c.b16 %v1185, %v1183
  %v1280 = vpack.c.b16 %v1186, %v1184
  %v1281 = vpack.c.b16 %v1189, %v1187
  %v1282 = vpack.c.b16 %v1190, %v1188
  %v1283 = vpack.c.b16 %v1193, %v1191
  %v1284 = vpack.c.b16 %v1194, %v1192
  %v1285 = vpack.c.b16 %v1197, %v1195
  %v1286 = vpack.c.b16 %v1198, %v1196
  %v1287 = vpack.c.b16 %v1201, %v1199
  %v1288 = vpack.c.b16 %v1202, %v1200
  %v1289 = vpack.c.b16 %v1205, %v1203
  %v1290 = vpack.c.b16 %v1206, %v1204
  %v1291 = vpack.c.b16 %v1209, %v1207
  %v1292 = vpack.c.b16 %v1210, %v1208
  %v1293 = vpack.c.b16 %v1213, %v1211
  %v1294 = vpack.c.b16 %v1214, %v1212
  %1375 = vmatprep.subr.bf16.mxu0 %v1216
  %1376 = vmatpush1.bf16.msra.mxu0 %v1215
  %1377 = vmatprep.subr.bf16.mxu0 %v1218
  %1378 = vmatpush1.bf16.msra.mxu0 %v1217
  %1379 = vmatprep.subr.bf16.mxu0 %v1220
  %1380 = vmatpush1.bf16.msra.mxu0 %v1219
  %1381 = vmatprep.subr.bf16.mxu0 %v1222
  %1382 = vmatpush1.bf16.msra.mxu0 %v1221
  %1383 = vmatprep.subr.bf16.mxu0 %v1224
  %1384 = vmatpush1.bf16.msra.mxu0 %v1223
  %1385 = vmatprep.subr.bf16.mxu0 %v1226
  %1386 = vmatpush1.bf16.msra.mxu0 %v1225
  %1387 = vmatprep.subr.bf16.mxu0 %v1228
  %1388 = vmatpush1.bf16.msra.mxu0 %v1227
  %1389 = vmatprep.subr.bf16.mxu0 %v1230
  %1390 = vmatpush1.bf16.msra.mxu0 %v1229
  %1391 = vmatprep.subr.bf16.mxu0 %v1232
  %1392 = vmatpush1.bf16.msra.mxu0 %v1231
  %1393 = vmatprep.subr.bf16.mxu0 %v1234
  %1394 = vmatpush1.bf16.msra.mxu0 %v1233
  %1395 = vmatprep.subr.bf16.mxu0 %v1236
  %1396 = vmatpush1.bf16.msra.mxu0 %v1235
  %1397 = vmatprep.subr.bf16.mxu0 %v1238
  %1398 = vmatpush1.bf16.msra.mxu0 %v1237
  %1399 = vmatprep.subr.bf16.mxu0 %v1240
  %1400 = vmatpush1.bf16.msra.mxu0 %v1239
  %1401 = vmatprep.subr.bf16.mxu0 %v1242
  %1402 = vmatpush1.bf16.msra.mxu0 %v1241
  %1403 = vmatprep.subr.bf16.mxu0 %v1244
  %1404 = vmatpush1.bf16.msra.mxu0 %v1243
  %1405 = vmatprep.subr.bf16.mxu0 %v1246
  %1406 = vmatpush1.bf16.msra.mxu0 %v1245
  %1407 = vmatprep.mubr.bf16.mxu0 %v824
  %1408 = vmatmul.mubr.bf16.gmra.mrb[0].mxu0 %v817
  %v1409 = vpop.f32.mrb[0].mxu0
  %v1410 = vadd.f32 0.0, %v1409
  %v1411 = vpop.f32.mrb[0].mxu0
  %v1412 = vadd.f32 0.0, %v1411
  %v1413 = vpop.f32.mrb[0].mxu0
  %v1414 = vadd.f32 0.0, %v1413
  %v1415 = vpop.f32.mrb[0].mxu0
  %v1416 = vadd.f32 0.0, %v1415
  %1417 = vmatprep.mubr.bf16.mxu0 %v831
  %1418 = vmatmul.mubr.bf16.gmra.mrb[0].mxu0 %v824
  %v1419 = vpop.f32.mrb[0].mxu0
  %v1420 = vadd.f32 0.0, %v1419
  %v1421 = vpop.f32.mrb[0].mxu0
  %v1422 = vadd.f32 0.0, %v1421
  %v1423 = vpop.f32.mrb[0].mxu0
  %v1424 = vadd.f32 0.0, %v1423
  %v1425 = vpop.f32.mrb[0].mxu0
  %v1426 = vadd.f32 0.0, %v1425
  %1427 = vmatprep.mubr.bf16.mxu0 %v838
  %1428 = vmatmul.mubr.bf16.gmra.mrb[0].mxu0 %v831
  %v1429 = vpop.f32.mrb[0].mxu0
  %v1430 = vadd.f32 0.0, %v1429
  %v1431 = vpop.f32.mrb[0].mxu0
  %v1432 = vadd.f32 0.0, %v1431
  %v1433 = vpop.f32.mrb[0].mxu0
  %v1434 = vadd.f32 0.0, %v1433
  %v1435 = vpop.f32.mrb[0].mxu0
  %v1436 = vadd.f32 0.0, %v1435
  %1437 = vmatprep.mubr.bf16.mxu0 %v845
  %1438 = vmatmul.mubr.bf16.gmra.mrb[0].mxu0 %v838
  %v1439 = vpop.f32.mrb[0].mxu0
  %v1440 = vadd.f32 0.0, %v1439
  %v1441 = vpop.f32.mrb[0].mxu0
  %v1442 = vadd.f32 0.0, %v1441
  %v1443 = vpop.f32.mrb[0].mxu0
  %v1444 = vadd.f32 0.0, %v1443
  %v1445 = vpop.f32.mrb[0].mxu0
  %v1446 = vadd.f32 0.0, %v1445
  %1447 = vmatprep.mubr.bf16.mxu0 %v852
  %1448 = vmatmul.mubr.bf16.gmra.mrb[0].mxu0 %v845
  %v1449 = vpop.f32.mrb[0].mxu0
  %v1450 = vadd.f32 0.0, %v1449
  %v1451 = vpop.f32.mrb[0].mxu0
  %v1452 = vadd.f32 0.0, %v1451
  %v1453 = vpop.f32.mrb[0].mxu0
  %v1454 = vadd.f32 0.0, %v1453
  %v1455 = vpop.f32.mrb[0].mxu0
  %v1456 = vadd.f32 0.0, %v1455
  %1457 = vmatprep.mubr.bf16.mxu0 %v859
  %1458 = vmatmul.mubr.bf16.gmra.mrb[0].mxu0 %v852
  %v1459 = vpop.f32.mrb[0].mxu0
  %v1460 = vadd.f32 0.0, %v1459
  %v1461 = vpop.f32.mrb[0].mxu0
  %v1462 = vadd.f32 0.0, %v1461
  %v1463 = vpop.f32.mrb[0].mxu0
  %v1464 = vadd.f32 0.0, %v1463
  %v1465 = vpop.f32.mrb[0].mxu0
  %v1466 = vadd.f32 0.0, %v1465
  %1467 = vmatprep.mubr.bf16.mxu0 %v866
  %1468 = vmatmul.mubr.bf16.gmra.mrb[0].mxu0 %v859
  %v1469 = vpop.f32.mrb[0].mxu0
  %v1470 = vadd.f32 0.0, %v1469
  %v1471 = vpop.f32.mrb[0].mxu0
  %v1472 = vadd.f32 0.0, %v1471
  %v1473 = vpop.f32.mrb[0].mxu0
  %v1474 = vadd.f32 0.0, %v1473
  %v1475 = vpop.f32.mrb[0].mxu0
  %v1476 = vadd.f32 0.0, %v1475
  %1477 = vmatprep.mubr.bf16.mxu0 %v873
  %1478 = vmatmul.mubr.bf16.gmra.mrb[0].mxu0 %v866
  %v1479 = vpop.f32.mrb[0].mxu0
  %v1480 = vadd.f32 0.0, %v1479
  %v1481 = vpop.f32.mrb[0].mxu0
  %v1482 = vadd.f32 0.0, %v1481
  %v1483 = vpop.f32.mrb[0].mxu0
  %v1484 = vadd.f32 0.0, %v1483
  %v1485 = vpop.f32.mrb[0].mxu0
  %v1486 = vadd.f32 0.0, %v1485
  %1487 = vdwg.mxu0
  %1488 = vmatprep.subr.bf16.mxu0 %v1248
  %1489 = vmatpush1.bf16.msra.mxu0 %v1247
  %1490 = vmatprep.subr.bf16.mxu0 %v1250
  %1491 = vmatpush1.bf16.msra.mxu0 %v1249
  %1492 = vmatprep.subr.bf16.mxu0 %v1252
  %1493 = vmatpush1.bf16.msra.mxu0 %v1251
  %1494 = vmatprep.subr.bf16.mxu0 %v1254
  %1495 = vmatpush1.bf16.msra.mxu0 %v1253
  %1496 = vmatprep.subr.bf16.mxu0 %v1256
  %1497 = vmatpush1.bf16.msra.mxu0 %v1255
  %1498 = vmatprep.subr.bf16.mxu0 %v1258
  %1499 = vmatpush1.bf16.msra.mxu0 %v1257
  %1500 = vmatprep.subr.bf16.mxu0 %v1260
  %1501 = vmatpush1.bf16.msra.mxu0 %v1259
  %1502 = vmatprep.subr.bf16.mxu0 %v1262
  %1503 = vmatpush1.bf16.msra.mxu0 %v1261
  %1504 = vmatprep.subr.bf16.mxu0 %v1264
  %1505 = vmatpush1.bf16.msra.mxu0 %v1263
  %1506 = vmatprep.subr.bf16.mxu0 %v1266
  %1507 = vmatpush1.bf16.msra.mxu0 %v1265
  %1508 = vmatprep.subr.bf16.mxu0 %v1268
  %1509 = vmatpush1.bf16.msra.mxu0 %v1267
  %1510 = vmatprep.subr.bf16.mxu0 %v1270
  %1511 = vmatpush1.bf16.msra.mxu0 %v1269
  %1512 = vmatprep.subr.bf16.mxu0 %v1272
  %1513 = vmatpush1.bf16.msra.mxu0 %v1271
  %1514 = vmatprep.subr.bf16.mxu0 %v1274
  %1515 = vmatpush1.bf16.msra.mxu0 %v1273
  %1516 = vmatprep.subr.bf16.mxu0 %v1276
  %1517 = vmatpush1.bf16.msra.mxu0 %v1275
  %1518 = vmatprep.subr.bf16.mxu0 %v1278
  %1519 = vmatpush1.bf16.msra.mxu0 %v1277
  %1520 = vmatprep.mubr.bf16.mxu0 %v838
  %1521 = vmatmul.mubr.bf16.gmra.mrb[0].mxu0 %v831
  %v1522 = vpop.f32.mrb[0].mxu0
  %v1523 = vadd.f32 %v1410, %v1522
  %v1524 = vpop.f32.mrb[0].mxu0
  %v1525 = vadd.f32 %v1412, %v1524
  %v1526 = vpop.f32.mrb[0].mxu0
  %v1527 = vadd.f32 %v1414, %v1526
  %v1528 = vpop.f32.mrb[0].mxu0
  %v1529 = vadd.f32 %v1416, %v1528
  %1530 = vmatprep.mubr.bf16.mxu0 %v845
  %1531 = vmatmul.mubr.bf16.gmra.mrb[0].mxu0 %v838
  %v1532 = vpop.f32.mrb[0].mxu0
  %v1533 = vadd.f32 %v1420, %v1532
  %v1534 = vpop.f32.mrb[0].mxu0
  %v1535 = vadd.f32 %v1422, %v1534
  %v1536 = vpop.f32.mrb[0].mxu0
  %v1537 = vadd.f32 %v1424, %v1536
  %v1538 = vpop.f32.mrb[0].mxu0
  %v1539 = vadd.f32 %v1426, %v1538
  %1540 = vmatprep.mubr.bf16.mxu0 %v852
  %1541 = vmatmul.mubr.bf16.gmra.mrb[0].mxu0 %v845
  %v1542 = vpop.f32.mrb[0].mxu0
  %v1543 = vadd.f32 %v1430, %v1542
  %v1544 = vpop.f32.mrb[0].mxu0
  %v1545 = vadd.f32 %v1432, %v1544
  %v1546 = vpop.f32.mrb[0].mxu0
  %v1547 = vadd.f32 %v1434, %v1546
  %v1548 = vpop.f32.mrb[0].mxu0
  %v1549 = vadd.f32 %v1436, %v1548
  %1550 = vmatprep.mubr.bf16.mxu0 %v859
  %1551 = vmatmul.mubr.bf16.gmra.mrb[0].mxu0 %v852
  %v1552 = vpop.f32.mrb[0].mxu0
  %v1553 = vadd.f32 %v1440, %v1552
  %v1554 = vpop.f32.mrb[0].mxu0
  %v1555 = vadd.f32 %v1442, %v1554
  %v1556 = vpop.f32.mrb[0].mxu0
  %v1557 = vadd.f32 %v1444, %v1556
  %v1558 = vpop.f32.mrb[0].mxu0
  %v1559 = vadd.f32 %v1446, %v1558
  %1560 = vmatprep.mubr.bf16.mxu0 %v866
  %1561 = vmatmul.mubr.bf16.gmra.mrb[0].mxu0 %v859
  %v1562 = vpop.f32.mrb[0].mxu0
  %v1563 = vadd.f32 %v1450, %v1562
  %v1564 = vpop.f32.mrb[0].mxu0
  %v1565 = vadd.f32 %v1452, %v1564
  %v1566 = vpop.f32.mrb[0].mxu0
  %v1567 = vadd.f32 %v1454, %v1566
  %v1568 = vpop.f32.mrb[0].mxu0
  %v1569 = vadd.f32 %v1456, %v1568
  %1570 = vmatprep.mubr.bf16.mxu0 %v873
  %1571 = vmatmul.mubr.bf16.gmra.mrb[0].mxu0 %v866
  %v1572 = vpop.f32.mrb[0].mxu0
  %v1573 = vadd.f32 %v1460, %v1572
  %v1574 = vpop.f32.mrb[0].mxu0
  %v1575 = vadd.f32 %v1462, %v1574
  %v1576 = vpop.f32.mrb[0].mxu0
  %v1577 = vadd.f32 %v1464, %v1576
  %v1578 = vpop.f32.mrb[0].mxu0
  %v1579 = vadd.f32 %v1466, %v1578
  %1580 = vmatprep.mubr.bf16.mxu0 %v880
  %1581 = vmatmul.mubr.bf16.gmra.mrb[0].mxu0 %v873
  %v1582 = vpop.f32.mrb[0].mxu0
  %v1583 = vadd.f32 %v1470, %v1582
  %v1584 = vpop.f32.mrb[0].mxu0
  %v1585 = vadd.f32 %v1472, %v1584
  %v1586 = vpop.f32.mrb[0].mxu0
  %v1587 = vadd.f32 %v1474, %v1586
  %v1588 = vpop.f32.mrb[0].mxu0
  %v1589 = vadd.f32 %v1476, %v1588
  %1590 = vmatprep.mubr.bf16.mxu0 %v887
  %1591 = vmatmul.mubr.bf16.gmra.mrb[0].mxu0 %v880
  %v1592 = vpop.f32.mrb[0].mxu0
  %v1593 = vadd.f32 %v1480, %v1592
  %v1594 = vpop.f32.mrb[0].mxu0
  %v1595 = vadd.f32 %v1482, %v1594
  %v1596 = vpop.f32.mrb[0].mxu0
  %v1597 = vadd.f32 %v1484, %v1596
  %v1598 = vpop.f32.mrb[0].mxu0
  %v1599 = vadd.f32 %v1486, %v1598
  %1600 = vdwg.mxu0
  %1601 = vmatprep.subr.bf16.mxu0 %v1280
  %1602 = vmatpush1.bf16.msra.mxu0 %v1279
  %1603 = vmatprep.subr.bf16.mxu0 %v1282
  %1604 = vmatpush1.bf16.msra.mxu0 %v1281
  %1605 = vmatprep.subr.bf16.mxu0 %v1284
  %1606 = vmatpush1.bf16.msra.mxu0 %v1283
  %1607 = vmatprep.subr.bf16.mxu0 %v1286
  %1608 = vmatpush1.bf16.msra.mxu0 %v1285
  %1609 = vmatprep.subr.bf16.mxu0 %v1288
  %1610 = vmatpush1.bf16.msra.mxu0 %v1287
  %1611 = vmatprep.subr.bf16.mxu0 %v1290
  %1612 = vmatpush1.bf16.msra.mxu0 %v1289
  %1613 = vmatprep.subr.bf16.mxu0 %v1292
  %1614 = vmatpush1.bf16.msra.mxu0 %v1291
  %1615 = vmatprep.subr.bf16.mxu0 %v1294
  %1616 = vmatpush1.bf16.msra.mxu0 %v1293
  %1617 = vmatprep.subr.bf16.mxu0 0
  %1618 = vmatpush1.bf16.msra.mxu0 0
  %1619 = vmatprep.subr.bf16.mxu0 0
  %1620 = vmatpush1.bf16.msra.mxu0 0
  %1621 = vmatprep.subr.bf16.mxu0 0
  %1622 = vmatpush1.bf16.msra.mxu0 0
  %1623 = vmatprep.subr.bf16.mxu0 0
  %1624 = vmatpush1.bf16.msra.mxu0 0
  %1625 = vmatprep.subr.bf16.mxu0 0
  %1626 = vmatpush1.bf16.msra.mxu0 0
  %1627 = vmatprep.subr.bf16.mxu0 0
  %1628 = vmatpush1.bf16.msra.mxu0 0
  %1629 = vmatprep.subr.bf16.mxu0 0
  %1630 = vmatpush1.bf16.msra.mxu0 0
  %1631 = vmatprep.subr.bf16.mxu0 0
  %1632 = vmatpush1.bf16.msra.mxu0 0
  %1633 = vmatprep.mubr.bf16.mxu0 0
  %1634 = vmatmul.mubr.bf16.gmra.mrb[0].mxu0 %v845
  %v1635 = vpop.f32.mrb[0].mxu0
  %v1636 = vadd.f32 %v1523, %v1635
  %v1637 = vpop.f32.mrb[0].mxu0
  %v1638 = vadd.f32 %v1525, %v1637
  %v1639 = vpop.f32.mrb[0].mxu0
  %v1640 = vadd.f32 %v1527, %v1639
  %v1641 = vpop.f32.mrb[0].mxu0
  %v1642 = vadd.f32 %v1529, %v1641
  %1643 = vmatprep.mubr.bf16.mxu0 0
  %1644 = vmatmul.mubr.bf16.gmra.mrb[0].mxu0 %v852
  %v1645 = vpop.f32.mrb[0].mxu0
  %v1646 = vadd.f32 %v1533, %v1645
  %v1647 = vpop.f32.mrb[0].mxu0
  %v1648 = vadd.f32 %v1535, %v1647
  %v1649 = vpop.f32.mrb[0].mxu0
  %v1650 = vadd.f32 %v1537, %v1649
  %v1651 = vpop.f32.mrb[0].mxu0
  %v1652 = vadd.f32 %v1539, %v1651
  %1653 = vmatprep.mubr.bf16.mxu0 0
  %1654 = vmatmul.mubr.bf16.gmra.mrb[0].mxu0 %v859
  %v1655 = vpop.f32.mrb[0].mxu0
  %v1656 = vadd.f32 %v1543, %v1655
  %v1657 = vpop.f32.mrb[0].mxu0
  %v1658 = vadd.f32 %v1545, %v1657
  %v1659 = vpop.f32.mrb[0].mxu0
  %v1660 = vadd.f32 %v1547, %v1659
  %v1661 = vpop.f32.mrb[0].mxu0
  %v1662 = vadd.f32 %v1549, %v1661
  %1663 = vmatprep.mubr.bf16.mxu0 0
  %1664 = vmatmul.mubr.bf16.gmra.mrb[0].mxu0 %v866
  %v1665 = vpop.f32.mrb[0].mxu0
  %v1666 = vadd.f32 %v1553, %v1665
  %v1667 = vpop.f32.mrb[0].mxu0
  %v1668 = vadd.f32 %v1555, %v1667
  %v1669 = vpop.f32.mrb[0].mxu0
  %v1670 = vadd.f32 %v1557, %v1669
  %v1671 = vpop.f32.mrb[0].mxu0
  %v1672 = vadd.f32 %v1559, %v1671
  %1673 = vmatprep.mubr.bf16.mxu0 0
  %1674 = vmatmul.mubr.bf16.gmra.mrb[0].mxu0 %v873
  %v1675 = vpop.f32.mrb[0].mxu0
  %v1676 = vadd.f32 %v1563, %v1675
  %v1677 = vpop.f32.mrb[0].mxu0
  %v1678 = vadd.f32 %v1565, %v1677
  %v1679 = vpop.f32.mrb[0].mxu0
  %v1680 = vadd.f32 %v1567, %v1679
  %v1681 = vpop.f32.mrb[0].mxu0
  %v1682 = vadd.f32 %v1569, %v1681
  %1683 = vmatprep.mubr.bf16.mxu0 0
  %1684 = vmatmul.mubr.bf16.gmra.mrb[0].mxu0 %v880
  %v1685 = vpop.f32.mrb[0].mxu0
  %v1686 = vadd.f32 %v1573, %v1685
  %v1687 = vpop.f32.mrb[0].mxu0
  %v1688 = vadd.f32 %v1575, %v1687
  %v1689 = vpop.f32.mrb[0].mxu0
  %v1690 = vadd.f32 %v1577, %v1689
  %v1691 = vpop.f32.mrb[0].mxu0
  %v1692 = vadd.f32 %v1579, %v1691
  %1693 = vmatprep.mubr.bf16.mxu0 0
  %1694 = vmatmul.mubr.bf16.gmra.mrb[0].mxu0 %v887
  %v1695 = vpop.f32.mrb[0].mxu0
  %v1696 = vadd.f32 %v1583, %v1695
  %v1697 = vpop.f32.mrb[0].mxu0
  %v1698 = vadd.f32 %v1585, %v1697
  %v1699 = vpop.f32.mrb[0].mxu0
  %v1700 = vadd.f32 %v1587, %v1699
  %v1701 = vpop.f32.mrb[0].mxu0
  %v1702 = vadd.f32 %v1589, %v1701
  %1703 = vmatprep.mubr.bf16.mxu0 0
  %1704 = vmatmul.mubr.bf16.gmra.mrb[0].mxu0 %v894
  %v1705 = vpop.f32.mrb[0].mxu0
  %v1706 = vadd.f32 %v1593, %v1705
  %v1707 = vpop.f32.mrb[0].mxu0
  %v1708 = vadd.f32 %v1595, %v1707
  %v1709 = vpop.f32.mrb[0].mxu0
  %v1710 = vadd.f32 %v1597, %v1709
  %v1711 = vpop.f32.mrb[0].mxu0
  %v1712 = vadd.f32 %v1599, %v1711
  %1713 = vdwg.mxu0
  %v1714 = vmax.f32 %v1636, %v1638
  %v1715 = vmax.f32 %v1640, %v1642
  %v1716 = vmax.f32 %v1646, %v1648
  %v1717 = vmax.f32 %v1650, %v1652
  %v1718 = vmax.f32 %v1656, %v1658
  %v1719 = vmax.f32 %v1660, %v1662
  %v1720 = vmax.f32 %v1666, %v1668
  %v1721 = vmax.f32 %v1670, %v1672
  %v1722 = vmax.f32 %v1676, %v1678
  %v1723 = vmax.f32 %v1680, %v1682
  %v1724 = vmax.f32 %v1686, %v1688
  %v1725 = vmax.f32 %v1690, %v1692
  %v1726 = vmax.f32 %v1696, %v1698
  %v1727 = vmax.f32 %v1700, %v1702
  %v1728 = vmax.f32 %v1706, %v1708
  %v1729 = vmax.f32 %v1710, %v1712
  %v1730 = vld [vmem:[%s4] sm:$0x1]
  %v1731 = vmax.f32 %v1714, %v1716
  %v1732 = vmax.f32 %v1715, %v1717
  %v1734 = vlaneseq
  %v1735 = vshrl.u32 %v1734, 7
  %v1736 = vsub.s32 0, %v1735
  %v1737 = vrot.slane %v1730, %v1736
  %v1739 = vadd.f32 %v1731, %v1737
  %v1740 = vadd.f32 %v1732, %v1737
  %v1741 = vmax.f32 %v1739, 0.0
  %v1742 = vmax.f32 %v1740, 0.0
  %v1743 = vpack.c.bf16 %v1742, %v1741
  %v1744 = vmax.f32 %v1718, %v1720
  %v1745 = vmax.f32 %v1719, %v1721
  %v1746 = vadd.f32 %v1744, %v1737
  %v1747 = vadd.f32 %v1745, %v1737
  %v1748 = vmax.f32 %v1746, 0.0
  %v1749 = vmax.f32 %v1747, 0.0
  %v1750 = vpack.c.bf16 %v1749, %v1748
  %v1751 = vmax.f32 %v1722, %v1724
  %v1752 = vmax.f32 %v1723, %v1725
  %v1753 = vadd.f32 %v1751, %v1737
  %v1754 = vadd.f32 %v1752, %v1737
  %v1755 = vmax.f32 %v1753, 0.0
  %v1756 = vmax.f32 %v1754, 0.0
  %v1757 = vpack.c.bf16 %v1756, %v1755
  %v1758 = vmax.f32 %v1726, %v1728
  %v1759 = vmax.f32 %v1727, %v1729
  %v1760 = vadd.f32 %v1758, %v1737
  %v1761 = vadd.f32 %v1759, %v1737
  %v1762 = vmax.f32 %v1760, 0.0
  %v1763 = vmax.f32 %v1761, 0.0
  %v1764 = vpack.c.bf16 %v1763, %v1762
  %v1765 = vld [vmem:[%s5] sm:$0xf]
  %v1766 = vld [vmem:[%s5 + $0x4] sm:$0xf]
  %v1767 = vld [vmem:[%s5 + $0x8] sm:$0xf]
  %v1768 = vld [vmem:[%s5 + $0xc] sm:$0xf]
  %v1769 = vld [vmem:[%s5 + $0x10] sm:$0xf]
  %v1770 = vld [vmem:[%s5 + $0x14] sm:$0xf]
  %v1771 = vld [vmem:[%s5 + $0x18] sm:$0xf]
  %v1772 = vld [vmem:[%s5 + $0x1c] sm:$0xf]
  %v1773 = vld [vmem:[%s5 + $0x20] sm:$0xf]
  %v1774 = vld [vmem:[%s5 + $0x24] sm:$0xf]
  %v1775 = vld [vmem:[%s5 + $0x28] sm:$0xf]
  %v1776 = vld [vmem:[%s5 + $0x2c] sm:$0xf]
  %v1777 = vld [vmem:[%s5 + $0x30] sm:$0xf]
  %v1778 = vld [vmem:[%s5 + $0x34] sm:$0xf]
  %v1779 = vld [vmem:[%s5 + $0x38] sm:$0xf]
  %v1780 = vld [vmem:[%s5 + $0x3c] sm:$0xf]
  %v1781 = vld [vmem:[%s5 + $0x40] sm:$0xf]
  %v1782 = vld [vmem:[%s5 + $0x44] sm:$0xf]
  %v1783 = vld [vmem:[%s5 + $0x48] sm:$0xf]
  %v1784 = vld [vmem:[%s5 + $0x4c] sm:$0xf]
  %v1785 = vld [vmem:[%s5 + $0x50] sm:$0xf]
  %v1786 = vld [vmem:[%s5 + $0x54] sm:$0xf]
  %v1787 = vld [vmem:[%s5 + $0x58] sm:$0xf]
  %v1788 = vld [vmem:[%s5 + $0x5c] sm:$0xf]
  %v1789 = vld [vmem:[%s5 + $0x60] sm:$0xf]
  %v1790 = vld [vmem:[%s5 + $0x64] sm:$0xf]
  %v1791 = vld [vmem:[%s5 + $0x68] sm:$0xf]
  %v1792 = vld [vmem:[%s5 + $0x6c] sm:$0xf]
  %v1793 = vld [vmem:[%s5 + $0x70] sm:$0xf]
  %v1794 = vld [vmem:[%s5 + $0x74] sm:$0xf]
  %v1795 = vld [vmem:[%s5 + $0x78] sm:$0xf]
  %v1796 = vld [vmem:[%s5 + $0x7c] sm:$0xf]
  %v1797 = vld [vmem:[%s5 + $0x80] sm:$0xf]
  %v1798 = vld [vmem:[%s5 + $0x84] sm:$0xf]
  %v1799 = vld [vmem:[%s5 + $0x88] sm:$0xf]
  %v1800 = vld [vmem:[%s5 + $0x8c] sm:$0xf]
  %v1801 = vld [vmem:[%s5 + $0x90] sm:$0xf]
  %v1802 = vld [vmem:[%s5 + $0x94] sm:$0xf]
  %v1803 = vld [vmem:[%s5 + $0x98] sm:$0xf]
  %v1804 = vld [vmem:[%s5 + $0x9c] sm:$0xf]
  %v1805 = vld [vmem:[%s5 + $0xa0] sm:$0xf]
  %v1806 = vld [vmem:[%s5 + $0xa4] sm:$0xf]
  %v1807 = vld [vmem:[%s5 + $0xa8] sm:$0xf]
  %v1808 = vld [vmem:[%s5 + $0xac] sm:$0xf]
  %v1809 = vld [vmem:[%s5 + $0xb0] sm:$0xf]
  %v1810 = vld [vmem:[%s5 + $0xb4] sm:$0xf]
  %v1811 = vld [vmem:[%s5 + $0xb8] sm:$0xf]
  %v1812 = vld [vmem:[%s5 + $0xbc] sm:$0xf]
  %v1813 = vld [vmem:[%s5 + $0xc0] sm:$0xf]
  %v1814 = vld [vmem:[%s5 + $0xc4] sm:$0xf]
  %v1815 = vld [vmem:[%s5 + $0xc8] sm:$0xf]
  %v1816 = vld [vmem:[%s5 + $0xcc] sm:$0xf]
  %v1817 = vld [vmem:[%s5 + $0xd0] sm:$0xf]
  %v1818 = vld [vmem:[%s5 + $0xd4] sm:$0xf]
  %v1819 = vld [vmem:[%s5 + $0xd8] sm:$0xf]
  %v1820 = vld [vmem:[%s5 + $0xdc] sm:$0xf]
  %v1821 = vld [vmem:[%s5 + $0xe0] sm:$0xf]
  %v1822 = vld [vmem:[%s5 + $0xe4] sm:$0xf]
  %v1823 = vld [vmem:[%s5 + $0xe8] sm:$0xf]
  %v1824 = vld [vmem:[%s5 + $0xec] sm:$0xf]
  %v1825 = vld [vmem:[%s5 + $0xf0] sm:$0xf]
  %v1826 = vld [vmem:[%s5 + $0xf4] sm:$0xf]
  %v1827 = vld [vmem:[%s5 + $0xf8] sm:$0xf]
  %v1828 = vld [vmem:[%s5 + $0xfc] sm:$0xf]
  %v1829 = vld [vmem:[%s6] sm:$0x1]
  %v1831 = vlaneseq
  %v1832 = vshrl.u32 %v1831, 7
  %v1833 = vsub.s32 0, %v1832
  %v1834 = vrot.slane %v1829, %v1833
  %v1900 = vunpack.c.l.b16 %v1765
  %v1901 = vunpack.c.l.b16 %v1766
  %v1902 = vunpack.c.l.b16 %v1767
  %v1903 = vunpack.c.l.b16 %v1768
  %v1904 = vunpack.c.l.b16 %v1769
  %v1905 = vunpack.c.l.b16 %v1770
  %v1906 = vunpack.c.l.b16 %v1771
  %v1907 = vunpack.c.l.b16 %v1772
  %v1908 = vunpack.c.l.b16 %v1773
  %v1909 = vunpack.c.l.b16 %v1774
  %v1910 = vunpack.c.l.b16 %v1775
  %v1911 = vunpack.c.l.b16 %v1776
  %v1912 = vunpack.c.l.b16 %v1777
  %v1913 = vunpack.c.l.b16 %v1778
  %v1914 = vunpack.c.l.b16 %v1779
  %v1915 = vunpack.c.l.b16 %v1780
  %v1916 = vunpack.c.l.b16 %v1781
  %v1917 = vunpack.c.l.b16 %v1782
  %v1918 = vunpack.c.l.b16 %v1783
  %v1919 = vunpack.c.l.b16 %v1784
  %v1920 = vunpack.c.l.b16 %v1785
  %v1921 = vunpack.c.l.b16 %v1786
  %v1922 = vunpack.c.l.b16 %v1787
  %v1923 = vunpack.c.l.b16 %v1788
  %v1924 = vunpack.c.l.b16 %v1789
  %v1925 = vunpack.c.l.b16 %v1790
  %v1926 = vunpack.c.l.b16 %v1791
  %v1927 = vunpack.c.l.b16 %v1792
  %v1928 = vunpack.c.l.b16 %v1793
  %v1929 = vunpack.c.l.b16 %v1794
  %v1930 = vunpack.c.l.b16 %v1795
  %v1931 = vunpack.c.l.b16 %v1796
  %v1932 = vunpack.c.l.b16 %v1797
  %v1933 = vunpack.c.l.b16 %v1798
  %v1934 = vunpack.c.l.b16 %v1799
  %v1935 = vunpack.c.l.b16 %v1800
  %v1936 = vunpack.c.l.b16 %v1801
  %v1937 = vunpack.c.l.b16 %v1802
  %v1938 = vunpack.c.l.b16 %v1803
  %v1939 = vunpack.c.l.b16 %v1804
  %v1940 = vunpack.c.l.b16 %v1805
  %v1941 = vunpack.c.l.b16 %v1806
  %v1942 = vunpack.c.l.b16 %v1807
  %v1943 = vunpack.c.l.b16 %v1808
  %v1944 = vunpack.c.l.b16 %v1809
  %v1945 = vunpack.c.l.b16 %v1810
  %v1946 = vunpack.c.l.b16 %v1811
  %v1947 = vunpack.c.l.b16 %v1812
  %v1948 = vunpack.c.l.b16 %v1813
  %v1949 = vunpack.c.l.b16 %v1814
  %v1950 = vunpack.c.l.b16 %v1815
  %v1951 = vunpack.c.l.b16 %v1816
  %v1952 = vunpack.c.l.b16 %v1817
  %v1953 = vunpack.c.l.b16 %v1818
  %v1954 = vunpack.c.l.b16 %v1819
  %v1955 = vunpack.c.l.b16 %v1820
  %v1956 = vunpack.c.l.b16 %v1821
  %v1957 = vunpack.c.l.b16 %v1822
  %v1958 = vunpack.c.l.b16 %v1823
  %v1959 = vunpack.c.l.b16 %v1824
  %v1960 = vunpack.c.l.b16 %v1825
  %v1961 = vunpack.c.l.b16 %v1826
  %v1962 = vunpack.c.l.b16 %v1827
  %v1963 = vunpack.c.l.b16 %v1828
  %v1964 = vpack.c.b16 %v1901, %v1900
  %v1965 = vpack.c.b16 %v1903, %v1902
  %v1966 = vpack.c.b16 %v1905, %v1904
  %v1967 = vpack.c.b16 %v1907, %v1906
  %v1968 = vpack.c.b16 %v1909, %v1908
  %v1969 = vpack.c.b16 %v1911, %v1910
  %v1970 = vpack.c.b16 %v1913, %v1912
  %v1971 = vpack.c.b16 %v1915, %v1914
  %v1972 = vpack.c.b16 %v1917, %v1916
  %v1973 = vpack.c.b16 %v1919, %v1918
  %v1974 = vpack.c.b16 %v1921, %v1920
  %v1975 = vpack.c.b16 %v1923, %v1922
  %v1976 = vpack.c.b16 %v1925, %v1924
  %v1977 = vpack.c.b16 %v1927, %v1926
  %v1978 = vpack.c.b16 %v1929, %v1928
  %v1979 = vpack.c.b16 %v1931, %v1930
  %v1980 = vpack.c.b16 %v1933, %v1932
  %v1981 = vpack.c.b16 %v1935, %v1934
  %v1982 = vpack.c.b16 %v1937, %v1936
  %v1983 = vpack.c.b16 %v1939, %v1938
  %v1984 = vpack.c.b16 %v1941, %v1940
  %v1985 = vpack.c.b16 %v1943, %v1942
  %v1986 = vpack.c.b16 %v1945, %v1944
  %v1987 = vpack.c.b16 %v1947, %v1946
  %v1988 = vpack.c.b16 %v1949, %v1948
  %v1989 = vpack.c.b16 %v1951, %v1950
  %v1990 = vpack.c.b16 %v1953, %v1952
  %v1991 = vpack.c.b16 %v1955, %v1954
  %v1992 = vpack.c.b16 %v1957, %v1956
  %v1993 = vpack.c.b16 %v1959, %v1958
  %v1994 = vpack.c.b16 %v1961, %v1960
  %v1995 = vpack.c.b16 %v1963, %v1962
  %2028 = vmatprep.subr.bf16.mxu0 0
  %2029 = vmatpush1.bf16.msra.mxu0 %v1964
  %2030 = vmatprep.subr.bf16.mxu0 0
  %2031 = vmatpush1.bf16.msra.mxu0 %v1965
  %2032 = vmatprep.subr.bf16.mxu0 0
  %2033 = vmatpush1.bf16.msra.mxu0 %v1966
  %2034 = vmatprep.subr.bf16.mxu0 0
  %2035 = vmatpush1.bf16.msra.mxu0 %v1967
  %2036 = vmatprep.subr.bf16.mxu0 0
  %2037 = vmatpush1.bf16.msra.mxu0 %v1968
  %2038 = vmatprep.subr.bf16.mxu0 0
  %2039 = vmatpush1.bf16.msra.mxu0 %v1969
  %2040 = vmatprep.subr.bf16.mxu0 0
  %2041 = vmatpush1.bf16.msra.mxu0 %v1970
  %2042 = vmatprep.subr.bf16.mxu0 0
  %2043 = vmatpush1.bf16.msra.mxu0 %v1971
  %2044 = vmatprep.subr.bf16.mxu0 0
  %2045 = vmatpush1.bf16.msra.mxu0 %v1972
  %2046 = vmatprep.subr.bf16.mxu0 0
  %2047 = vmatpush1.bf16.msra.mxu0 %v1973
  %2048 = vmatprep.subr.bf16.mxu0 0
  %2049 = vmatpush1.bf16.msra.mxu0 %v1974
  %2050 = vmatprep.subr.bf16.mxu0 0
  %2051 = vmatpush1.bf16.msra.mxu0 %v1975
  %2052 = vmatprep.subr.bf16.mxu0 0
  %2053 = vmatpush1.bf16.msra.mxu0 %v1976
  %2054 = vmatprep.subr.bf16.mxu0 0
  %2055 = vmatpush1.bf16.msra.mxu0 %v1977
  %2056 = vmatprep.subr.bf16.mxu0 0
  %2057 = vmatpush1.bf16.msra.mxu0 %v1978
  %2058 = vmatprep.subr.bf16.mxu0 0
  %2059 = vmatpush1.bf16.msra.mxu0 %v1979
  %2060 = vmatprep.mubr.bf16.mxu0 %v1750
  %2061 = vmatmul.mubr.bf16.gmra.mrb[0].mxu0 %v1743
  %v2062 = vpop.f32.mrb[0].mxu0
  %v2063 = vadd.f32 %v1834, %v2062
  %v2064 = vpop.f32.mrb[0].mxu0
  %v2065 = vpop.f32.mrb[0].mxu0
  %v2066 = vadd.f32 %v1834, %v2065
  %v2067 = vpop.f32.mrb[0].mxu0
  %2068 = vdwg.mxu0
  %2069 = vmatprep.subr.bf16.mxu0 0
  %2070 = vmatpush1.bf16.msra.mxu0 %v1980
  %2071 = vmatprep.subr.bf16.mxu0 0
  %2072 = vmatpush1.bf16.msra.mxu0 %v1981
  %2073 = vmatprep.subr.bf16.mxu0 0
  %2074 = vmatpush1.bf16.msra.mxu0 %v1982
  %2075 = vmatprep.subr.bf16.mxu0 0
  %2076 = vmatpush1.bf16.msra.mxu0 %v1983
  %2077 = vmatprep.subr.bf16.mxu0 0
  %2078 = vmatpush1.bf16.msra.mxu0 %v1984
  %2079 = vmatprep.subr.bf16.mxu0 0
  %2080 = vmatpush1.bf16.msra.mxu0 %v1985
  %2081 = vmatprep.subr.bf16.mxu0 0
  %2082 = vmatpush1.bf16.msra.mxu0 %v1986
  %2083 = vmatprep.subr.bf16.mxu0 0
  %2084 = vmatpush1.bf16.msra.mxu0 %v1987
  %2085 = vmatprep.subr.bf16.mxu0 0
  %2086 = vmatpush1.bf16.msra.mxu0 %v1988
  %2087 = vmatprep.subr.bf16.mxu0 0
  %2088 = vmatpush1.bf16.msra.mxu0 %v1989
  %2089 = vmatprep.subr.bf16.mxu0 0
  %2090 = vmatpush1.bf16.msra.mxu0 %v1990
  %2091 = vmatprep.subr.bf16.mxu0 0
  %2092 = vmatpush1.bf16.msra.mxu0 %v1991
  %2093 = vmatprep.subr.bf16.mxu0 0
  %2094 = vmatpush1.bf16.msra.mxu0 %v1992
  %2095 = vmatprep.subr.bf16.mxu0 0
  %2096 = vmatpush1.bf16.msra.mxu0 %v1993
  %2097 = vmatprep.subr.bf16.mxu0 0
  %2098 = vmatpush1.bf16.msra.mxu0 %v1994
  %2099 = vmatprep.subr.bf16.mxu0 0
  %2100 = vmatpush1.bf16.msra.mxu0 %v1995
  %2101 = vmatprep.mubr.bf16.mxu0 %v1764
  %2102 = vmatmul.mubr.bf16.gmra.mrb[0].mxu0 %v1757
  %v2103 = vpop.f32.mrb[0].mxu0
  %v2104 = vadd.f32 %v2063, %v2103
  %v2105 = vpop.f32.mrb[0].mxu0
  %v2106 = vpop.f32.mrb[0].mxu0
  %v2107 = vadd.f32 %v2066, %v2106
  %v2108 = vpop.f32.mrb[0].mxu0
  %2109 = vdwg.mxu0
  %v2110 = vmax.f32 %v2104, 0.0
  %v2111 = vmax.f32 %v2107, 0.0
  %v2112 = vpack.c.bf16 %v2111, %v2110
  %v2113 = vld [vmem:[%s7] sm:$0xf]
  %v2114 = vld [vmem:[%s7 + $0x4] sm:$0xf]
  %v2115 = vld [vmem:[%s7 + $0x8] sm:$0xf]
  %v2116 = vld [vmem:[%s7 + $0xc] sm:$0xf]
  %v2117 = vld [vmem:[%s7 + $0x10] sm:$0xf]
  %v2118 = vld [vmem:[%s7 + $0x14] sm:$0xf]
  %v2119 = vld [vmem:[%s7 + $0x18] sm:$0xf]
  %v2120 = vld [vmem:[%s7 + $0x1c] sm:$0xf]
  %v2121 = vld [vmem:[%s7 + $0x20] sm:$0xf]
  %v2122 = vld [vmem:[%s7 + $0x24] sm:$0xf]
  %v2123 = vld [vmem:[%s7 + $0x28] sm:$0xf]
  %v2124 = vld [vmem:[%s7 + $0x2c] sm:$0xf]
  %v2125 = vld [vmem:[%s7 + $0x30] sm:$0xf]
  %v2126 = vld [vmem:[%s7 + $0x34] sm:$0xf]
  %v2127 = vld [vmem:[%s7 + $0x38] sm:$0xf]
  %v2128 = vld [vmem:[%s7 + $0x3c] sm:$0xf]
  %v2129 = vld [vmem:[%s8] sm:$0x1]
  %v2131 = vlaneseq
  %v2132 = vshrl.u32 %v2131, 7
  %v2133 = vsub.s32 0, %v2132
  %v2134 = vrot.slane %v2129, %v2133
  %v2152 = vunpack.c.l.b16 %v2113
  %v2153 = vunpack.c.l.b16 %v2114
  %v2154 = vunpack.c.l.b16 %v2115
  %v2155 = vunpack.c.l.b16 %v2116
  %v2156 = vunpack.c.l.b16 %v2117
  %v2157 = vunpack.c.l.b16 %v2118
  %v2158 = vunpack.c.l.b16 %v2119
  %v2159 = vunpack.c.l.b16 %v2120
  %v2160 = vunpack.c.l.b16 %v2121
  %v2161 = vunpack.c.l.b16 %v2122
  %v2162 = vunpack.c.l.b16 %v2123
  %v2163 = vunpack.c.l.b16 %v2124
  %v2164 = vunpack.c.l.b16 %v2125
  %v2165 = vunpack.c.l.b16 %v2126
  %v2166 = vunpack.c.l.b16 %v2127
  %v2167 = vunpack.c.l.b16 %v2128
  %v2168 = vpack.c.b16 %v2153, %v2152
  %v2169 = vpack.c.b16 %v2155, %v2154
  %v2170 = vpack.c.b16 %v2157, %v2156
  %v2171 = vpack.c.b16 %v2159, %v2158
  %v2172 = vpack.c.b16 %v2161, %v2160
  %v2173 = vpack.c.b16 %v2163, %v2162
  %v2174 = vpack.c.b16 %v2165, %v2164
  %v2175 = vpack.c.b16 %v2167, %v2166
  %2184 = vmatprep.subr.bf16.mxu0 0
  %2185 = vmatpush1.bf16.msra.mxu0 %v2168
  %2186 = vmatprep.subr.bf16.mxu0 0
  %2187 = vmatpush1.bf16.msra.mxu0 %v2169
  %2188 = vmatprep.subr.bf16.mxu0 0
  %2189 = vmatpush1.bf16.msra.mxu0 %v2170
  %2190 = vmatprep.subr.bf16.mxu0 0
  %2191 = vmatpush1.bf16.msra.mxu0 %v2171
  %2192 = vmatprep.subr.bf16.mxu0 0
  %2193 = vmatpush1.bf16.msra.mxu0 %v2172
  %2194 = vmatprep.subr.bf16.mxu0 0
  %2195 = vmatpush1.bf16.msra.mxu0 %v2173
  %2196 = vmatprep.subr.bf16.mxu0 0
  %2197 = vmatpush1.bf16.msra.mxu0 %v2174
  %2198 = vmatprep.subr.bf16.mxu0 0
  %2199 = vmatpush1.bf16.msra.mxu0 %v2175
  %2200 = vmatprep.subr.bf16.mxu0 0
  %2201 = vmatpush1.bf16.msra.mxu0 0
  %2202 = vmatprep.subr.bf16.mxu0 0
  %2203 = vmatpush1.bf16.msra.mxu0 0
  %2204 = vmatprep.subr.bf16.mxu0 0
  %2205 = vmatpush1.bf16.msra.mxu0 0
  %2206 = vmatprep.subr.bf16.mxu0 0
  %2207 = vmatpush1.bf16.msra.mxu0 0
  %2208 = vmatprep.subr.bf16.mxu0 0
  %2209 = vmatpush1.bf16.msra.mxu0 0
  %2210 = vmatprep.subr.bf16.mxu0 0
  %2211 = vmatpush1.bf16.msra.mxu0 0
  %2212 = vmatprep.subr.bf16.mxu0 0
  %2213 = vmatpush1.bf16.msra.mxu0 0
  %2214 = vmatprep.subr.bf16.mxu0 0
  %2215 = vmatpush1.bf16.msra.mxu0 0
  %2216 = vmatprep.mubr.bf16.mxu0 0
  %2217 = vmatmul.mubr.bf16.gmra.mrb[0].mxu0 %v2112
  %v2218 = vpop.f32.mrb[0].mxu0
  %v2219 = vadd.f32 %v2134, %v2218
  %v2220 = vpop.f32.mrb[0].mxu0
  %v2221 = vpop.f32.mrb[0].mxu0
  %v2222 = vadd.f32 %v2134, %v2221
  %v2223 = vpop.f32.mrb[0].mxu0
  %2224 = vdwg.mxu0
  %2225 = vmax.xlane.f32.xlu0 %v2219
  %v2226 = vpop.xlane.xlu0 %2225
  %2227 = vmax.xlane.f32.xlu0 %v2222
  %v2228 = vpop.xlane.xlu0 %2227
  %v2229 = vsub.f32 %v2219, %v2226
  %v2230 = vsub.f32 %v2222, %v2228
  %v2231 = vmul.f32 %v2229, 1.442695
  %v2232 = vpow.pop %v2231
  %v2233 = vmul.f32 %v2230, 1.442695
  %v2234 = vpow.pop %v2233
  %2235 = vadd.xlane.f32.xlu0 %v2232
  %v2236 = vpop.xlane.xlu0 %2235
  %2237 = vadd.xlane.f32.xlu0 %v2234
  %v2238 = vpop.xlane.xlu0 %2237
  %v2239 = vlog2.pop %v2236
  %v2240 = vmul.f32 %v2239, 0.6931472
  %v2241 = vlog2.pop %v2238
  %v2242 = vmul.f32 %v2241, 0.6931472
  %v2243 = vsub.f32 %v2229, %v2240
  %v2244 = vsub.f32 %v2230, %v2242
  %2245 = vst [vmem:[%s9] sm:$0xff] %v2243
  %2246 = vst [vmem:[%s9 + $0x8] sm:$0xff] %v2244
  // Predicated region
  $region38: #{forward.1} parent=0 // pred_check
    _
  $region39: #{forward.1} parent=0 // pred_check_branch
    %2248 = sbr.rel (0) target = $region41
  $region40: #{forward.1} parent=0 // pred_region
    _
  $region41: #{forward.1} parent=0 // pred_fallthru
    _
  // Predicated region
  $region42: #{forward.1} parent=0 // pred_check
    _
  $region43: #{forward.1} parent=0 // pred_check_branch
    %2250 = sbr.rel (0) target = $region45
  $region44: #{forward.1} parent=0 // pred_region
    _
  $region45: #{forward.1} parent=0 // pred_fallthru
    _

</llo_original>
